<compile_context>
chip_gen: v7x
topology: tpu7x:2x2x1
jax: 0.10.0
libtpu: 0.0.40
codegen_flags: <defaults>
</compile_context>

<pallas_src>
import functools

import jax
import jax.numpy as jnp
from jax.experimental import pallas as pl
from jax.experimental.pallas import tpu as pltpu

LANE = 128


def _round_up(v, m):
    return (v + m - 1) // m * m


def _pad2d(a, rows, cols):
    out = jnp.zeros((rows, cols), a.dtype)
    return out.at[: a.shape[0], : a.shape[1]].set(a)


def _vmem_limit_bytes():
    """Per-generation VMEM budget (~75% of physical: ~96 MiB on v5e/v6e's 128 MiB,
    ~48 MiB on v7x's 64 MiB).  Falls back to the conservative v7x figure."""
    cap = 64 * 1024 * 1024
    try:
        cap = int(getattr(pltpu.get_tpu_info(), "vmem_capacity_bytes", cap))
    except Exception:
        pass
    return min(cap * 3 // 4, 100 * 1024 * 1024)


def _fused_vmem_bytes(n, fp, hp, cp):
    """Rough VMEM footprint of the single-pass fused kernel (inputs + temporaries)."""
    weights = (2 * fp * hp + hp * 2 * cp) * 2 + (hp + cp) * 4
    io = n * n * 1 + n * 4 + n * fp * 2 + n * cp * 4
    tmp = n * n * 2 + n * (fp * 4 + 2 * fp * 2 + hp * 4 + 2 * cp * 4 + cp * 4)
    return weights + io + tmp


def _pick_row_tile(n, vmem_limit):
    """Largest power-of-two row tile that (a) divides N, (b) keeps the double-buffered
    int8 adjacency stream within ~1/3 of the VMEM budget, and (c) leaves >= 2 grid
    steps so both v7x TensorCores get work."""
    cap = min(2048, max(8, vmem_limit // (6 * n)), max(8, n // 2))
    t = 8
    while t * 2 <= cap and n % (t * 2) == 0:
        t *= 2
    if n % t != 0:
        t = n  # fall back to a single full-height tile (block == full dims is exempt)
    return t


def _resident_spec(block_shape, index_map):
    """Single-buffered BlockSpec for grid-invariant (resident) operands."""
    if hasattr(pl, "Buffered"):
        try:
            return pl.BlockSpec(block_shape, index_map, pipeline_mode=pl.Buffered(1))
        except TypeError:
            pass
    return pl.BlockSpec(block_shape, index_map)


# ---------------- fused single-pass kernel (adjacency resident; adj read once) ----------------
def _sage_fused_kernel(adj_ref, invdeg_ref, x_ref, w1_ref, b1_ref, w2_ref, b2_ref,
                       out_ref, *, num_classes):
    f32 = jnp.float32
    cp = out_ref.shape[1]
    mask = adj_ref[...].astype(jnp.bfloat16)          # exact {0,1}; single HBM read
    inv = invdeg_ref[...]                             # (N, 1) f32 per-row 1/deg
    x = x_ref[...]
    # mean aggregation: (mask @ x) scaled per row on the VPU
    aggr = jnp.dot(mask, x, preferred_element_type=f32) * inv
    # fused l/r projection: [aggr | x] @ [W1l ; W1r]  (single MXU call, doubled K)
    cat = jnp.concatenate([aggr.astype(jnp.bfloat16), x], axis=1)
    h = jnp.maximum(jnp.dot(cat, w1_ref[...], preferred_element_type=f32) + b1_ref[...], 0.0)
    # TODO(synk): Dropout(p=0.5) is eval-mode identity; training-mode mask
    #             (pltpu.prng_seed + prng_random_bits) not emitted.
    # fused + reassociated layer 2: t = h @ [W2l | W2r]; z = adj @ t_l + t_r + b2
    t = jnp.dot(h.astype(jnp.bfloat16), w2_ref[...], preferred_element_type=f32)
    z = (jnp.dot(mask, t[:, :cp].astype(jnp.bfloat16), preferred_element_type=f32) * inv
         + t[:, cp:] + b2_ref[...])
    # log_softmax over the real class lanes only (output lanes padded to 128)
    lane = jax.lax.broadcasted_iota(jnp.int32, z.shape, 1)
    z = jnp.where(lane < num_classes, z, f32(-1e30))
    m = jnp.max(z, axis=1, keepdims=True)
    s = z - m
    out_ref[...] = s - jnp.log(jnp.sum(jnp.exp(s), axis=1, keepdims=True))


# ---------------- tiled path, stage 1: layer-1 SAGEConv (+ReLU) + layer-2 projections ----------------
def _sage_stage1_kernel(adj_ref, invdeg_ref, xfull_ref, w1_ref, b1_ref, w2_ref,
                        tl_ref, tr_ref):
    f32 = jnp.float32
    tile, cp = tl_ref.shape
    mask = adj_ref[...].astype(jnp.bfloat16)           # exact {0,1} row tile
    # mean aggregation for this row tile: (mask @ x) * inv_deg  -> [T, Fp]
    aggr = jnp.dot(mask, xfull_ref[...], preferred_element_type=f32) * invdeg_ref[...]
    # self term: slice this tile's rows out of the resident x block (no extra HBM read)
    row0 = pl.multiple_of(pl.program_id(0) * tile, tile)
    x_self = xfull_ref[pl.ds(row0, tile), :]
    # fused l/r projection: [aggr | x] @ [W1l ; W1r]
    cat = jnp.concatenate([aggr.astype(jnp.bfloat16), x_self], axis=1)
    h = jnp.maximum(jnp.dot(cat, w1_ref[...], preferred_element_type=f32) + b1_ref[...], 0.0)
    # TODO(synk): Dropout(p=0.5) is eval-mode identity in this forward.
    # fused + reassociated layer-2 projections: t = h @ [W2l | W2r] -> [T, 2*Cp]
    t = jnp.dot(h.astype(jnp.bfloat16), w2_ref[...], preferred_element_type=f32)
    tl_ref[...] = t[:, :cp].astype(tl_ref.dtype)        # lin_l(h): aggregated in stage 2
    tr_ref[...] = t[:, cp:].astype(tr_ref.dtype)        # lin_r(h): row-local residual


# ---------------- tiled path, stage 2: layer-2 aggregation + residual + log_softmax ----------------
def _sage_stage2_kernel(adj_ref, invdeg_ref, tl_ref, tr_ref, b2_ref, out_ref, *, num_classes):
    f32 = jnp.float32
    mask = adj_ref[...].astype(jnp.bfloat16)
    # reassociated aggregation: adj @ (h @ W2l)  => O(N^2 * Cp) instead of O(N^2 * H)
    z = (jnp.dot(mask, tl_ref[...], preferred_element_type=f32) * invdeg_ref[...]
         + tr_ref[...].astype(f32) + b2_ref[...])
    lane = jax.lax.broadcasted_iota(jnp.int32, z.shape, 1)
    z = jnp.where(lane < num_classes, z, f32(-1e30))
    m = jnp.max(z, axis=1, keepdims=True)
    s = z - m
    out_ref[...] = s - jnp.log(jnp.sum(jnp.exp(s), axis=1, keepdims=True))


def _forward_fused(adj_mask, inv_deg, x_bf, p, n, classes, vmem_limit):
    fp, hp, cp = p["fp"], p["hp"], p["cp"]
    cost = pl.CostEstimate(
        flops=2 * n * n * fp + 2 * n * (2 * fp) * hp + 2 * n * hp * (2 * cp) + 2 * n * n * cp,
        transcendentals=n * cp,
        bytes_accessed=n * n + 4 * n + 2 * n * fp
        + 2 * (2 * fp * hp + hp * 2 * cp) + 4 * (hp + cp) + 4 * n * cp,
    )
    return pl.pallas_call(
        functools.partial(_sage_fused_kernel, num_classes=classes),
        out_shape=jax.ShapeDtypeStruct((n, cp), jnp.float32),
        grid=(1,),
        in_specs=[
            pl.BlockSpec((n, n), lambda i: (0, 0)),          # int8 adjacency mask (resident)
            pl.BlockSpec((n, 1), lambda i: (0, 0)),          # per-row 1/deg (f32)
            pl.BlockSpec((n, fp), lambda i: (0, 0)),         # x (bf16)
            pl.BlockSpec((2 * fp, hp), lambda i: (0, 0)),    # [W1l ; W1r]
            pl.BlockSpec((1, hp), lambda i: (0, 0)),         # b1
            pl.BlockSpec((hp, 2 * cp), lambda i: (0, 0)),    # [W2l | W2r]
            pl.BlockSpec((1, cp), lambda i: (0, 0)),         # b2
        ],
        out_specs=pl.BlockSpec((n, cp), lambda i: (0, 0)),
        compiler_params=pltpu.CompilerParams(
            dimension_semantics=("arbitrary",),
            vmem_limit_bytes=vmem_limit),
        cost_estimate=cost,
    )(adj_mask, inv_deg, x_bf, p["w1"], p["b1"], p["w2"], p["b2"])


def _forward_tiled(adj_mask, inv_deg, x_bf, p, n, classes, vmem_limit, row_tile):
    fp, hp, cp = p["fp"], p["hp"], p["cp"]
    t = row_tile or _pick_row_tile(n, vmem_limit)
    assert n % t == 0, "row tile must divide N (pad N if needed)"
    grid = (n // t,)

    cparams = pltpu.CompilerParams(
        dimension_semantics=("parallel",),
        vmem_limit_bytes=vmem_limit,
    )

    cost1 = pl.CostEstimate(
        flops=2 * n * n * fp + 2 * n * (2 * fp) * hp + 2 * n * hp * (2 * cp),
        transcendentals=0,
        bytes_accessed=n * n + 4 * n + 2 * n * fp
        + 2 * (2 * fp * hp + hp * 2 * cp) + 4 * hp + 4 * n * cp,
    )
    t_l, t_r = pl.pallas_call(
        _sage_stage1_kernel,
        out_shape=(jax.ShapeDtypeStruct((n, cp), jnp.bfloat16),
                   jax.ShapeDtypeStruct((n, cp), jnp.bfloat16)),
        grid=grid,
        in_specs=[
            pl.BlockSpec((t, n), lambda i: (i, 0)),           # adj mask row tile (streamed, 2-buffered)
            pl.BlockSpec((t, 1), lambda i: (i, 0)),           # per-row 1/deg tile
            _resident_spec((n, fp), lambda i: (0, 0)),        # x (resident, single-buffered)
            _resident_spec((2 * fp, hp), lambda i: (0, 0)),   # [W1l ; W1r]
            _resident_spec((1, hp), lambda i: (0, 0)),        # b1
            _resident_spec((hp, 2 * cp), lambda i: (0, 0)),   # [W2l | W2r]
        ],
        out_specs=(pl.BlockSpec((t, cp), lambda i: (i, 0)),
                   pl.BlockSpec((t, cp), lambda i: (i, 0))),
        compiler_params=cparams,
        cost_estimate=cost1,
    )(adj_mask, inv_deg, x_bf, p["w1"], p["b1"], p["w2"])

    cost2 = pl.CostEstimate(
        flops=2 * n * n * cp,
        transcendentals=n * cp,
        bytes_accessed=n * n + 4 * n + 4 * n * cp + 4 * cp + 4 * n * cp,
    )
    out_padded = pl.pallas_call(
        functools.partial(_sage_stage2_kernel, num_classes=classes),
        out_shape=jax.ShapeDtypeStruct((n, cp), jnp.float32),
        grid=grid,
        in_specs=[
            pl.BlockSpec((t, n), lambda i: (i, 0)),           # adj mask row tile (streamed)
            pl.BlockSpec((t, 1), lambda i: (i, 0)),           # per-row 1/deg tile
            _resident_spec((n, cp), lambda i: (0, 0)),        # t_l (resident, single-buffered)
            pl.BlockSpec((t, cp), lambda i: (i, 0)),          # t_r row tile
            _resident_spec((1, cp), lambda i: (0, 0)),        # b2
        ],
        out_specs=pl.BlockSpec((t, cp), lambda i: (i, 0)),
        compiler_params=cparams,
        cost_estimate=cost2,
    )(adj_mask, inv_deg, t_l, t_r, p["b2"])
    return out_padded


def graphsage_forward(adj_mask, inv_deg, x, prepped, *, mode="auto", row_tile=None):
    """adj_mask: [N, N] int8 {0,1}; inv_deg: [N, 1] f32; x: [N, F] f32 node features."""
    n, _ = x.shape
    assert adj_mask.shape == (n, n) and inv_deg.shape == (n, 1)
    fp, hp, cp = prepped["fp"], prepped["hp"], prepped["cp"]
    classes = prepped["classes"]

    vmem_limit = _vmem_limit_bytes()
    x_bf = _pad2d(x, n, fp).astype(jnp.bfloat16)   # N*Fp bytes; tiny next to the adj stream

    if mode == "auto":
        mode = "fused" if _fused_vmem_bytes(n, fp, hp, cp) <= vmem_limit // 2 else "tiled"

    if mode == "fused":
        out_padded = _forward_fused(adj_mask, inv_deg, x_bf, prepped, n, classes, vmem_limit)
    else:
        out_padded = _forward_tiled(adj_mask, inv_deg, x_bf, prepped, n, classes,
                                    vmem_limit, row_tile)
    # kernel stores are lane-dense (128); strip the padded class lanes here.
    return out_padded[:, :classes]


def build_adjacency_mask(edge_index, num_nodes):
    """Exact {0,1} int8 adjacency mask + per-row f32 1/deg from edge_index [2, E]
    (src -> dst).  Built once in the kernel's storage dtype (no per-forward cast).
    Note: parallel edges are deduplicated (PyG scatter-mean counts them); fine for
    simple graphs."""
    src, dst = edge_index[0], edge_index[1]
    adj = jnp.zeros((num_nodes, num_nodes), jnp.int8).at[dst, src].set(1)
    deg = adj.astype(jnp.float32).sum(axis=1, keepdims=True)
    inv_deg = jnp.where(deg > 0, 1.0 / jnp.maximum(deg, 1.0), 0.0)
    return adj, inv_deg


def prepare_params(params):
    """Pad / fuse / cast the SAGEConv weights once (not per forward call)."""
    feature, hidden = params["w1l_t"].shape
    classes = params["w2l_t"].shape[1]
    fp, hp, cp = _round_up(feature, LANE), _round_up(hidden, LANE), _round_up(classes, LANE)
    w1 = jnp.concatenate(
        [_pad2d(params["w1l_t"], fp, hp), _pad2d(params["w1r_t"], fp, hp)], axis=0
    ).astype(jnp.bfloat16)                                             # [2*Fp, Hp]
    b1 = _pad2d(params["b1"], 1, hp).astype(jnp.float32)               # [1, Hp]
    w2 = (jnp.zeros((hp, 2 * cp), jnp.float32)
          .at[:hidden, :classes].set(params["w2l_t"])
          .at[:hidden, cp:cp + classes].set(params["w2r_t"])
          ).astype(jnp.bfloat16)                                       # [Hp, 2*Cp]
    b2 = _pad2d(params["b2"], 1, cp).astype(jnp.float32)               # [1, Cp]
    return dict(w1=w1, b1=b1, w2=w2, b2=b2,
                feature=feature, hidden=hidden, classes=classes, fp=fp, hp=hp, cp=cp)


def init_params(key, feature, hidden, classes):
    ks = jax.random.split(key, 6)
    scale1 = 1.0 / jnp.sqrt(feature)
    scale2 = 1.0 / jnp.sqrt(hidden)
    return {
        # stored pre-transposed: [in, out]
        "w1l_t": jax.random.uniform(ks[0], (feature, hidden), jnp.float32, -scale1, scale1),
        "w1r_t": jax.random.uniform(ks[1], (feature, hidden), jnp.float32, -scale1, scale1),
        "b1":    jax.random.uniform(ks[2], (1, hidden), jnp.float32, -scale1, scale1),
        "w2l_t": jax.random.uniform(ks[3], (hidden, classes), jnp.float32, -scale2, scale2),
        "w2r_t": jax.random.uniform(ks[4], (hidden, classes), jnp.float32, -scale2, scale2),
        "b2":    jax.random.uniform(ks[5], (1, classes), jnp.float32, -scale2, scale2),
    }


def reference_forward(adj_mask, inv_deg, x, params):
    """Pure-JAX f32 reference with the original (un-reassociated) association."""
    adj = adj_mask.astype(jnp.float32) * inv_deg
    aggr1 = adj @ x
    h = jnp.maximum(aggr1 @ params["w1l_t"] + x @ params["w1r_t"] + params["b1"], 0.0)
    aggr2 = adj @ h
    z = aggr2 @ params["w2l_t"] + h @ params["w2r_t"] + params["b2"]
    return jax.nn.log_softmax(z, axis=1)


if __name__ == "__main__":
    key = jax.random.PRNGKey(0)
    N, F_IN, HIDDEN, CLASSES, E = 256, 16, 32, 8, 1024

    k_feat, k_edge, k_param = jax.random.split(key, 3)
    x = jax.random.normal(k_feat, (N, F_IN), jnp.float32)
    edge_index = jax.random.randint(k_edge, (2, E), 0, N, dtype=jnp.int32)

    adj_mask, inv_deg = build_adjacency_mask(edge_index, N)
    params = init_params(k_param, F_IN, HIDDEN, CLASSES)
    prepped = prepare_params(params)

    ref = reference_forward(adj_mask, inv_deg, x, params)

    # 1) auto mode: N=256 fits VMEM easily -> fused single-pass kernel (adj read once).
    out = graphsage_forward(adj_mask, inv_deg, x, prepped, mode="auto")
    out = jax.block_until_ready(out)
    assert out.shape == (N, CLASSES)
    err = float(jnp.max(jnp.abs(out - ref)))
    assert err < 0.2, f"fused max abs err vs reference: {err}"
    # log_softmax rows should sum (in prob space) to ~1
    assert bool(jnp.all(jnp.abs(jnp.sum(jnp.exp(out), axis=1) - 1.0) < 1e-3))

    # 2) two-stage row-tiled path (the large-N code path), grid of 2 row tiles.
    out_tiled = graphsage_forward(adj_mask, inv_deg, x, prepped, mode="tiled", row_tile=128)
    out_tiled = jax.block_until_ready(out_tiled)
    err_t = float(jnp.max(jnp.abs(out_tiled - ref)))
    assert err_t < 0.2, f"tiled max abs err vs reference: {err_t}"

    print("KERNEL_OK")
</pallas_src>

<mosaic_0001>
module attributes {stable_mosaic.version = 11 : i64} {
  func.func @_sage_fused_kernel(%arg0: i32, %arg1: memref<256x256xi8, #tpu.memory_space<vmem>>, %arg2: memref<256x1xf32, #tpu.memory_space<vmem>>, %arg3: memref<256x128xbf16, #tpu.memory_space<vmem>>, %arg4: memref<256x128xbf16, #tpu.memory_space<vmem>>, %arg5: memref<1x128xf32, #tpu.memory_space<vmem>>, %arg6: memref<128x256xbf16, #tpu.memory_space<vmem>>, %arg7: memref<1x128xf32, #tpu.memory_space<vmem>>, %arg8: memref<256x128xf32, #tpu.memory_space<vmem>>) attributes {dimension_semantics = [#tpu.dimension_semantics<arbitrary>], iteration_bounds = array<i64: 1>, scalar_prefetch = 0 : i64, scratch_operands = 0 : i64, tpu.core_type = #tpu.core_type<tc>, window_params = [{pipeline_mode = #tpu.pipeline_mode<synchronous>, transform_indices = @transform_0, window_bounds = array<i64: 256, 256>}, {pipeline_mode = #tpu.pipeline_mode<synchronous>, transform_indices = @transform_1, window_bounds = array<i64: 256, 1>}, {pipeline_mode = #tpu.pipeline_mode<synchronous>, transform_indices = @transform_2, window_bounds = array<i64: 256, 128>}, {pipeline_mode = #tpu.pipeline_mode<synchronous>, transform_indices = @transform_3, window_bounds = array<i64: 256, 128>}, {pipeline_mode = #tpu.pipeline_mode<synchronous>, transform_indices = @transform_4, window_bounds = array<i64: 1, 128>}, {pipeline_mode = #tpu.pipeline_mode<synchronous>, transform_indices = @transform_5, window_bounds = array<i64: 128, 256>}, {pipeline_mode = #tpu.pipeline_mode<synchronous>, transform_indices = @transform_6, window_bounds = array<i64: 1, 128>}, {pipeline_mode = #tpu.pipeline_mode<synchronous>, transform_indices = @transform_7, window_bounds = array<i64: 256, 128>}]} {
    %c0 = arith.constant 0 : index
    %c0_0 = arith.constant 0 : index
    %0 = vector.load %arg1[%c0, %c0_0] : memref<256x256xi8, #tpu.memory_space<vmem>>, vector<256x256xi8>
    %1 = arith.sitofp %0 : vector<256x256xi8> to vector<256x256xbf16>
    %c0_1 = arith.constant 0 : index
    %c0_2 = arith.constant 0 : index
    %2 = vector.load %arg2[%c0_1, %c0_2] : memref<256x1xf32, #tpu.memory_space<vmem>>, vector<256x1xf32>
    %c0_3 = arith.constant 0 : index
    %c0_4 = arith.constant 0 : index
    %3 = vector.load %arg3[%c0_3, %c0_4] : memref<256x128xbf16, #tpu.memory_space<vmem>>, vector<256x128xbf16>
    %cst = arith.constant dense<0.000000e+00> : vector<256x128xf32>
    %4 = tpu.matmul %1, %3, %cst {dimension_numbers = #tpu.dot_dimension_numbers<[1], [0], [0], [1], [0, 0, 1, 1], [], []>} : vector<256x256xbf16>, vector<256x128xbf16>, vector<256x128xf32> -> vector<256x128xf32>
    %5 = vector.broadcast %2 : vector<256x1xf32> to vector<256x128xf32>
    %6 = arith.mulf %4, %5 : vector<256x128xf32>
    %7 = arith.truncf %6 : vector<256x128xf32> to vector<256x128xbf16>
    %8 = tpu.concatenate %7, %3 in 1 : vector<256x128xbf16>, vector<256x128xbf16> -> vector<256x256xbf16>
    %c0_5 = arith.constant 0 : index
    %c0_6 = arith.constant 0 : index
    %9 = vector.load %arg4[%c0_5, %c0_6] : memref<256x128xbf16, #tpu.memory_space<vmem>>, vector<256x128xbf16>
    %cst_7 = arith.constant dense<0.000000e+00> : vector<256x128xf32>
    %10 = tpu.matmul %8, %9, %cst_7 {dimension_numbers = #tpu.dot_dimension_numbers<[1], [0], [0], [1], [0, 0, 1, 1], [], []>} : vector<256x256xbf16>, vector<256x128xbf16>, vector<256x128xf32> -> vector<256x128xf32>
    %c0_8 = arith.constant 0 : index
    %c0_9 = arith.constant 0 : index
    %11 = vector.load %arg5[%c0_8, %c0_9] : memref<1x128xf32, #tpu.memory_space<vmem>>, vector<1x128xf32>
    %12 = vector.broadcast %11 : vector<1x128xf32> to vector<256x128xf32>
    %13 = arith.addf %10, %12 : vector<256x128xf32>
    %cst_10 = arith.constant 0.000000e+00 : f32
    %14 = vector.broadcast %cst_10 : f32 to vector<256x128xf32>
    %15 = arith.maximumf %13, %14 : vector<256x128xf32>
    %16 = arith.truncf %15 : vector<256x128xf32> to vector<256x128xbf16>
    %c0_11 = arith.constant 0 : index
    %c0_12 = arith.constant 0 : index
    %17 = vector.load %arg6[%c0_11, %c0_12] : memref<128x256xbf16, #tpu.memory_space<vmem>>, vector<128x256xbf16>
    %cst_13 = arith.constant dense<0.000000e+00> : vector<256x256xf32>
    %18 = tpu.matmul %16, %17, %cst_13 {dimension_numbers = #tpu.dot_dimension_numbers<[1], [0], [0], [1], [0, 0, 1, 1], [], []>} : vector<256x128xbf16>, vector<128x256xbf16>, vector<256x256xf32> -> vector<256x256xf32>
    %19 = vector.extract_strided_slice %18 {offsets = [0, 0], sizes = [256, 128], strides = [1, 1]} : vector<256x256xf32> to vector<256x128xf32>
    %20 = arith.truncf %19 : vector<256x128xf32> to vector<256x128xbf16>
    %cst_14 = arith.constant dense<0.000000e+00> : vector<256x128xf32>
    %21 = tpu.matmul %1, %20, %cst_14 {dimension_numbers = #tpu.dot_dimension_numbers<[1], [0], [0], [1], [0, 0, 1, 1], [], []>} : vector<256x256xbf16>, vector<256x128xbf16>, vector<256x128xf32> -> vector<256x128xf32>
    %22 = vector.broadcast %2 : vector<256x1xf32> to vector<256x128xf32>
    %23 = arith.mulf %21, %22 : vector<256x128xf32>
    %24 = vector.extract_strided_slice %18 {offsets = [0, 128], sizes = [256, 128], strides = [1, 1]} : vector<256x256xf32> to vector<256x128xf32>
    %25 = arith.addf %23, %24 : vector<256x128xf32>
    %c0_15 = arith.constant 0 : index
    %c0_16 = arith.constant 0 : index
    %26 = vector.load %arg7[%c0_15, %c0_16] : memref<1x128xf32, #tpu.memory_space<vmem>>, vector<1x128xf32>
    %27 = vector.broadcast %26 : vector<1x128xf32> to vector<256x128xf32>
    %28 = arith.addf %25, %27 : vector<256x128xf32>
    %29 = tpu.iota {dimensions = array<i32: 1>} : vector<256x128xi32>
    %c8_i32 = arith.constant 8 : i32
    %30 = vector.broadcast %c8_i32 : i32 to vector<256x128xi32>
    %31 = arith.cmpi slt, %29, %30 : vector<256x128xi32>
    %cst_17 = arith.constant -1.000000e+30 : f32
    %32 = vector.broadcast %cst_17 : f32 to vector<256x128xf32>
    %33 = arith.select %31, %28, %32 : vector<256x128xi1>, vector<256x128xf32>
    %cst_18 = arith.constant dense<0xFF800000> : vector<256xf32>
    %34 = vector.multi_reduction <maximumf>, %33, %cst_18 [1] : vector<256x128xf32> to vector<256xf32>
    %35 = vector.shape_cast %34 : vector<256xf32> to vector<256x1xf32>
    %36 = vector.broadcast %35 : vector<256x1xf32> to vector<256x128xf32>
    %37 = arith.subf %33, %36 : vector<256x128xf32>
    %38 = math.exp %37 : vector<256x128xf32>
    %cst_19 = arith.constant dense<0.000000e+00> : vector<256xf32>
    %39 = vector.multi_reduction <add>, %38, %cst_19 [1] : vector<256x128xf32> to vector<256xf32>
    %40 = vector.shape_cast %39 : vector<256xf32> to vector<256x1xf32>
    %41 = math.log %40 : vector<256x1xf32>
    %42 = vector.broadcast %41 : vector<256x1xf32> to vector<256x128xf32>
    %43 = arith.subf %37, %42 : vector<256x128xf32>
    %c0_20 = arith.constant 0 : index
    %c0_21 = arith.constant 0 : index
    %44 = vector.load %arg8[%c0_20, %c0_21] : memref<256x128xf32, #tpu.memory_space<vmem>>, vector<256x128xf32>
    tpu.vector_store %arg8[%c0_20, %c0_21], %43 {strides = array<i32>} : memref<256x128xf32, #tpu.memory_space<vmem>>, vector<256x128xf32>,
    return
  }
  func.func @transform_0(%arg0: i32) -> (i32, i32) {
    %c0_i32 = arith.constant 0 : i32
    %c0_i32_0 = arith.constant 0 : i32
    %c0_i32_1 = arith.constant 0 : i32
    return %c0_i32, %c0_i32_0 : i32, i32
  }
  func.func @transform_1(%arg0: i32) -> (i32, i32) {
    %c0_i32 = arith.constant 0 : i32
    %c0_i32_0 = arith.constant 0 : i32
    %c0_i32_1 = arith.constant 0 : i32
    return %c0_i32, %c0_i32_0 : i32, i32
  }
  func.func @transform_2(%arg0: i32) -> (i32, i32) {
    %c0_i32 = arith.constant 0 : i32
    %c0_i32_0 = arith.constant 0 : i32
    %c0_i32_1 = arith.constant 0 : i32
    return %c0_i32, %c0_i32_0 : i32, i32
  }
  func.func @transform_3(%arg0: i32) -> (i32, i32) {
    %c0_i32 = arith.constant 0 : i32
    %c0_i32_0 = arith.constant 0 : i32
    %c0_i32_1 = arith.constant 0 : i32
    return %c0_i32, %c0_i32_0 : i32, i32
  }
  func.func @transform_4(%arg0: i32) -> (i32, i32) {
    %c0_i32 = arith.constant 0 : i32
    %c0_i32_0 = arith.constant 0 : i32
    %c0_i32_1 = arith.constant 0 : i32
    return %c0_i32, %c0_i32_0 : i32, i32
  }
  func.func @transform_5(%arg0: i32) -> (i32, i32) {
    %c0_i32 = arith.constant 0 : i32
    %c0_i32_0 = arith.constant 0 : i32
    %c0_i32_1 = arith.constant 0 : i32
    return %c0_i32, %c0_i32_0 : i32, i32
  }
  func.func @transform_6(%arg0: i32) -> (i32, i32) {
    %c0_i32 = arith.constant 0 : i32
    %c0_i32_0 = arith.constant 0 : i32
    %c0_i32_1 = arith.constant 0 : i32
    return %c0_i32, %c0_i32_0 : i32, i32
  }
  func.func @transform_7(%arg0: i32) -> (i32, i32) {
    %c0_i32 = arith.constant 0 : i32
    %c0_i32_0 = arith.constant 0 : i32
    %c0_i32_1 = arith.constant 0 : i32
    return %c0_i32, %c0_i32_0 : i32, i32
  }
}

</mosaic_0001>

<llo_original>
// kernel: tpu_custom_call.1
$region0: #{tpu_custom_call.1}
  #allocation0 [shape = 'u32[]', space=smem, size = 0x4, offset = 0x4, fixed_abs, tag = 'smem constant byte address 0x4 - core index']
  #allocation1 [shape = 'u32[144,128]{1,0:T(1,128)}', space=vmem, size = 0x12000, scoped, tag = 'internal scratch']
  %s0 = inlined_call_operand.vmem [shape: s8[256,256], index: 0, kind: input, shape index: {}]
  %s1 = inlined_call_operand.vmem [shape: f32[256,1], index: 1, kind: input, shape index: {}]
  %s2 = inlined_call_operand.vmem [shape: bf16[256,128], index: 2, kind: input, shape index: {}]
  %s3 = inlined_call_operand.hbm [shape: bf16[256,128], index: 3, kind: input, shape index: {}]
  %s4 = inlined_call_operand.vmem [shape: f32[1,128], index: 4, kind: input, shape index: {}]
  %s5 = inlined_call_operand.hbm [shape: bf16[128,256], index: 5, kind: input, shape index: {}]
  %s6 = inlined_call_operand.vmem [shape: f32[1,128], index: 6, kind: input, shape index: {}]
  %s7 = inlined_call_operand.hbm [shape: f32[256,128], index: 7, kind: output, shape index: {}]
  %s8 = sld [smem:[#allocation0]]
  $region46: #{tpu_custom_call.1} parent=0
    _
  %s10 = ssub.s32 1, %s8
  %s11 = scalar_select 0, %s10, %s8
  $region1: #{tpu_custom_call.1} parent=0
    #allocation2 [shape = 'u8[65536]{0}', space=vmem, size = 0x10000, scoped, tag = 'input window, operand 3, single buffered']
    #allocation3 [shape = 's32[1]{0}', space=sflag, size = 0x4, scoped, tag = 'scoped memory for tpu_custom_call.1']
    #allocation4 [shape = 's32[1]{0}', space=sflag, size = 0x4, scoped, tag = 'scoped memory for tpu_custom_call.1']
    #allocation5 [shape = 'u8[65536]{0}', space=vmem, size = 0x10000, scoped, tag = 'input window, operand 5, single buffered']
    #allocation6 [shape = 's32[1]{0}', space=sflag, size = 0x4, scoped, tag = 'scoped memory for tpu_custom_call.1']
    #allocation7 [shape = 'u8[131072]{0}', space=vmem, size = 0x20000, scoped, tag = 'output window, operand 0, single buffered']
    %12 = vsyncpa [#allocation3], 0
    %13 = vsyncpa [#allocation6], 0
    %14 = vsyncpa [#allocation4], 0
    // Predicated region
    $region2: #{tpu_custom_call.1} parent=1 // pred_check
      _
    $region3: #{tpu_custom_call.1} parent=1 // pred_check_branch
      %16 = sbr.rel (0) target = $region5
    $region4: #{tpu_custom_call.1} parent=1 // pred_region
      _
    $region5: #{tpu_custom_call.1} parent=1 // pred_fallthru
      _
    // Predicated region
    $region6: #{tpu_custom_call.1} parent=1 // pred_check
      _
    $region7: #{tpu_custom_call.1} parent=1 // pred_check_branch
      %18 = sbr.rel (0) target = $region9
    $region8: #{tpu_custom_call.1} parent=1 // pred_region
      _
    $region9: #{tpu_custom_call.1} parent=1 // pred_fallthru
      _
    // Predicated region
    $region10: #{tpu_custom_call.1} parent=1 // pred_check
      _
    $region11: #{tpu_custom_call.1} parent=1 // pred_check_branch
      %20 = sbr.rel (0) target = $region13
    $region12: #{tpu_custom_call.1} parent=1 // pred_region
      _
    $region13: #{tpu_custom_call.1} parent=1 // pred_fallthru
      _
    // Predicated region
    $region14: #{tpu_custom_call.1} parent=1 // pred_check
      _
    $region15: #{tpu_custom_call.1} parent=1 // pred_check_branch
      %22 = sbr.rel (0) target = $region17
    $region16: #{tpu_custom_call.1} parent=1 // pred_region
      %s24 = ssub.s32 2048, 2048
      %25 = vsyncadd [#allocation3], %s24
      %s26 = sshll.u32 [#allocation2], 4
      %s27 = int_to_ptr.vmem [resolvable:$true] %s26
      %32 = dma.hbm_to_vmem [thread:$0]  %s3, 2048, %s27, [#allocation3], 64, 64, 4
    $region17: #{tpu_custom_call.1} parent=1 // pred_fallthru
      _
    // Predicated region
    $region18: #{tpu_custom_call.1} parent=1 // pred_check
      _
    $region19: #{tpu_custom_call.1} parent=1 // pred_check_branch
      %34 = sbr.rel (0) target = $region21
    $region20: #{tpu_custom_call.1} parent=1 // pred_region
      _
    $region21: #{tpu_custom_call.1} parent=1 // pred_fallthru
      _
    // Predicated region
    $region22: #{tpu_custom_call.1} parent=1 // pred_check
      _
    $region23: #{tpu_custom_call.1} parent=1 // pred_check_branch
      %36 = sbr.rel (0) target = $region25
    $region24: #{tpu_custom_call.1} parent=1 // pred_region
      %s38 = ssub.s32 2048, 2048
      %39 = vsyncadd [#allocation6], %s38
      %s40 = sshll.u32 [#allocation5], 4
      %s41 = int_to_ptr.vmem [resolvable:$true] %s40
      %46 = dma.hbm_to_vmem [thread:$0]  %s5, 2048, %s41, [#allocation6], 128, 128, 8
    $region25: #{tpu_custom_call.1} parent=1 // pred_fallthru
      _
    // Predicated region
    $region26: #{tpu_custom_call.1} parent=1 // pred_check
      _
    $region27: #{tpu_custom_call.1} parent=1 // pred_check_branch
      %48 = sbr.rel (0) target = $region29
    $region28: #{tpu_custom_call.1} parent=1 // pred_region
      _
    $region29: #{tpu_custom_call.1} parent=1 // pred_fallthru
      _
    // Predicated region
    $region30: #{tpu_custom_call.1} parent=1 // pred_check
      _
    $region31: #{tpu_custom_call.1} parent=1 // pred_check_branch
      %50 = sbr.rel (0) target = $region33
    $region32: #{tpu_custom_call.1} parent=1 // pred_region
      %51 = dma.done [#allocation3], 2048
    $region33: #{tpu_custom_call.1} parent=1 // pred_fallthru
      _
    // Predicated region
    $region34: #{tpu_custom_call.1} parent=1 // pred_check
      _
    $region35: #{tpu_custom_call.1} parent=1 // pred_check_branch
      %53 = sbr.rel (0) target = $region37
    $region36: #{tpu_custom_call.1} parent=1 // pred_region
      %54 = dma.done [#allocation6], 2048
    $region37: #{tpu_custom_call.1} parent=1 // pred_fallthru
      _
    %v56 = vld [vmem:[%s0] sm:$0xff]
    %v57 = vld [vmem:[%s0 + $0x8] sm:$0xff]
    %v58 = vld [vmem:[%s0 + $0x10] sm:$0xff]
    %v59 = vld [vmem:[%s0 + $0x18] sm:$0xff]
    %v60 = vld [vmem:[%s0 + $0x20] sm:$0xff]
    %v61 = vld [vmem:[%s0 + $0x28] sm:$0xff]
    %v62 = vld [vmem:[%s0 + $0x30] sm:$0xff]
    %v63 = vld [vmem:[%s0 + $0x38] sm:$0xff]
    %v64 = vld [vmem:[%s0 + $0x40] sm:$0xff]
    %v65 = vld [vmem:[%s0 + $0x48] sm:$0xff]
    %v66 = vld [vmem:[%s0 + $0x50] sm:$0xff]
    %v67 = vld [vmem:[%s0 + $0x58] sm:$0xff]
    %v68 = vld [vmem:[%s0 + $0x60] sm:$0xff]
    %v69 = vld [vmem:[%s0 + $0x68] sm:$0xff]
    %v70 = vld [vmem:[%s0 + $0x70] sm:$0xff]
    %v71 = vld [vmem:[%s0 + $0x78] sm:$0xff]
    %v72 = vunpack.c.l.s8.bf16 %v56
    %v73 = vunpack.c.l.s8.bf16 %v57
    %v74 = vunpack.c.h.s8.bf16 %v56
    %v75 = vunpack.c.h.s8.bf16 %v57
    %v76 = vunpack.c.l.s8.bf16 %v58
    %v77 = vunpack.c.l.s8.bf16 %v59
    %v78 = vunpack.c.h.s8.bf16 %v58
    %v79 = vunpack.c.h.s8.bf16 %v59
    %v80 = vunpack.c.l.s8.bf16 %v60
    %v81 = vunpack.c.l.s8.bf16 %v61
    %v82 = vunpack.c.h.s8.bf16 %v60
    %v83 = vunpack.c.h.s8.bf16 %v61
    %v84 = vunpack.c.l.s8.bf16 %v62
    %v85 = vunpack.c.l.s8.bf16 %v63
    %v86 = vunpack.c.h.s8.bf16 %v62
    %v87 = vunpack.c.h.s8.bf16 %v63
    %v88 = vunpack.c.l.s8.bf16 %v64
    %v89 = vunpack.c.l.s8.bf16 %v65
    %v90 = vunpack.c.h.s8.bf16 %v64
    %v91 = vunpack.c.h.s8.bf16 %v65
    %v92 = vunpack.c.l.s8.bf16 %v66
    %v93 = vunpack.c.l.s8.bf16 %v67
    %v94 = vunpack.c.h.s8.bf16 %v66
    %v95 = vunpack.c.h.s8.bf16 %v67
    %v96 = vunpack.c.l.s8.bf16 %v68
    %v97 = vunpack.c.l.s8.bf16 %v69
    %v98 = vunpack.c.h.s8.bf16 %v68
    %v99 = vunpack.c.h.s8.bf16 %v69
    %v100 = vunpack.c.l.s8.bf16 %v70
    %v101 = vunpack.c.l.s8.bf16 %v71
    %v102 = vunpack.c.h.s8.bf16 %v70
    %v103 = vunpack.c.h.s8.bf16 %v71
    %v104 = vld [vmem:[%s1] sm:$0xff]
    %v105 = vld [vmem:[%s1 + $0x8] sm:$0xff]
    %v106 = vld [vmem:[%s1 + $0x10] sm:$0xff]
    %v107 = vld [vmem:[%s1 + $0x18] sm:$0xff]
    %v108 = vld [vmem:[%s1 + $0x20] sm:$0xff]
    %v109 = vld [vmem:[%s1 + $0x28] sm:$0xff]
    %v110 = vld [vmem:[%s1 + $0x30] sm:$0xff]
    %v111 = vld [vmem:[%s1 + $0x38] sm:$0xff]
    %v112 = vld [vmem:[%s1 + $0x40] sm:$0xff]
    %v113 = vld [vmem:[%s1 + $0x48] sm:$0xff]
    %v114 = vld [vmem:[%s1 + $0x50] sm:$0xff]
    %v115 = vld [vmem:[%s1 + $0x58] sm:$0xff]
    %v116 = vld [vmem:[%s1 + $0x60] sm:$0xff]
    %v117 = vld [vmem:[%s1 + $0x68] sm:$0xff]
    %v118 = vld [vmem:[%s1 + $0x70] sm:$0xff]
    %v119 = vld [vmem:[%s1 + $0x78] sm:$0xff]
    %v120 = vld [vmem:[%s1 + $0x80] sm:$0xff]
    %v121 = vld [vmem:[%s1 + $0x88] sm:$0xff]
    %v122 = vld [vmem:[%s1 + $0x90] sm:$0xff]
    %v123 = vld [vmem:[%s1 + $0x98] sm:$0xff]
    %v124 = vld [vmem:[%s1 + $0xa0] sm:$0xff]
    %v125 = vld [vmem:[%s1 + $0xa8] sm:$0xff]
    %v126 = vld [vmem:[%s1 + $0xb0] sm:$0xff]
    %v127 = vld [vmem:[%s1 + $0xb8] sm:$0xff]
    %v128 = vld [vmem:[%s1 + $0xc0] sm:$0xff]
    %v129 = vld [vmem:[%s1 + $0xc8] sm:$0xff]
    %v130 = vld [vmem:[%s1 + $0xd0] sm:$0xff]
    %v131 = vld [vmem:[%s1 + $0xd8] sm:$0xff]
    %v132 = vld [vmem:[%s1 + $0xe0] sm:$0xff]
    %v133 = vld [vmem:[%s1 + $0xe8] sm:$0xff]
    %v134 = vld [vmem:[%s1 + $0xf0] sm:$0xff]
    %v135 = vld [vmem:[%s1 + $0xf8] sm:$0xff]
    %v136 = vld [vmem:[%s2] sm:$0xf]
    %v137 = vld [vmem:[%s2 + $0x4] sm:$0xf]
    %v138 = vld [vmem:[%s2 + $0x8] sm:$0xf]
    %v139 = vld [vmem:[%s2 + $0xc] sm:$0xf]
    %v140 = vld [vmem:[%s2 + $0x10] sm:$0xf]
    %v141 = vld [vmem:[%s2 + $0x14] sm:$0xf]
    %v142 = vld [vmem:[%s2 + $0x18] sm:$0xf]
    %v143 = vld [vmem:[%s2 + $0x1c] sm:$0xf]
    %v144 = vld [vmem:[%s2 + $0x20] sm:$0xf]
    %v145 = vld [vmem:[%s2 + $0x24] sm:$0xf]
    %v146 = vld [vmem:[%s2 + $0x28] sm:$0xf]
    %v147 = vld [vmem:[%s2 + $0x2c] sm:$0xf]
    %v148 = vld [vmem:[%s2 + $0x30] sm:$0xf]
    %v149 = vld [vmem:[%s2 + $0x34] sm:$0xf]
    %v150 = vld [vmem:[%s2 + $0x38] sm:$0xf]
    %v151 = vld [vmem:[%s2 + $0x3c] sm:$0xf]
    %v152 = vld [vmem:[%s2 + $0x40] sm:$0xf]
    %v153 = vld [vmem:[%s2 + $0x44] sm:$0xf]
    %v154 = vld [vmem:[%s2 + $0x48] sm:$0xf]
    %v155 = vld [vmem:[%s2 + $0x4c] sm:$0xf]
    %v156 = vld [vmem:[%s2 + $0x50] sm:$0xf]
    %v157 = vld [vmem:[%s2 + $0x54] sm:$0xf]
    %v158 = vld [vmem:[%s2 + $0x58] sm:$0xf]
    %v159 = vld [vmem:[%s2 + $0x5c] sm:$0xf]
    %v160 = vld [vmem:[%s2 + $0x60] sm:$0xf]
    %v161 = vld [vmem:[%s2 + $0x64] sm:$0xf]
    %v162 = vld [vmem:[%s2 + $0x68] sm:$0xf]
    %v163 = vld [vmem:[%s2 + $0x6c] sm:$0xf]
    %v164 = vld [vmem:[%s2 + $0x70] sm:$0xf]
    %v165 = vld [vmem:[%s2 + $0x74] sm:$0xf]
    %v166 = vld [vmem:[%s2 + $0x78] sm:$0xf]
    %v167 = vld [vmem:[%s2 + $0x7c] sm:$0xf]
    %v200 = vunpack.c.l.b16 %v136
    %v201 = vunpack.c.l.b16 %v137
    %v202 = vunpack.c.l.b16 %v138
    %v203 = vunpack.c.l.b16 %v139
    %v204 = vunpack.c.l.b16 %v140
    %v205 = vunpack.c.l.b16 %v141
    %v206 = vunpack.c.l.b16 %v142
    %v207 = vunpack.c.l.b16 %v143
    %v208 = vunpack.c.l.b16 %v144
    %v209 = vunpack.c.l.b16 %v145
    %v210 = vunpack.c.l.b16 %v146
    %v211 = vunpack.c.l.b16 %v147
    %v212 = vunpack.c.l.b16 %v148
    %v213 = vunpack.c.l.b16 %v149
    %v214 = vunpack.c.l.b16 %v150
    %v215 = vunpack.c.l.b16 %v151
    %v216 = vunpack.c.l.b16 %v152
    %v217 = vunpack.c.l.b16 %v153
    %v218 = vunpack.c.l.b16 %v154
    %v219 = vunpack.c.l.b16 %v155
    %v220 = vunpack.c.l.b16 %v156
    %v221 = vunpack.c.l.b16 %v157
    %v222 = vunpack.c.l.b16 %v158
    %v223 = vunpack.c.l.b16 %v159
    %v224 = vunpack.c.l.b16 %v160
    %v225 = vunpack.c.l.b16 %v161
    %v226 = vunpack.c.l.b16 %v162
    %v227 = vunpack.c.l.b16 %v163
    %v228 = vunpack.c.l.b16 %v164
    %v229 = vunpack.c.l.b16 %v165
    %v230 = vunpack.c.l.b16 %v166
    %v231 = vunpack.c.l.b16 %v167
    %v232 = vpack.c.b16 %v201, %v200
    %v233 = vpack.c.b16 %v203, %v202
    %v234 = vpack.c.b16 %v205, %v204
    %v235 = vpack.c.b16 %v207, %v206
    %v236 = vpack.c.b16 %v209, %v208
    %v237 = vpack.c.b16 %v211, %v210
    %v238 = vpack.c.b16 %v213, %v212
    %v239 = vpack.c.b16 %v215, %v214
    %v240 = vpack.c.b16 %v217, %v216
    %v241 = vpack.c.b16 %v219, %v218
    %v242 = vpack.c.b16 %v221, %v220
    %v243 = vpack.c.b16 %v223, %v222
    %v244 = vpack.c.b16 %v225, %v224
    %v245 = vpack.c.b16 %v227, %v226
    %v246 = vpack.c.b16 %v229, %v228
    %v247 = vpack.c.b16 %v231, %v230
    %264 = vmatprep.subr.bf16.mxu0 0
    %265 = vmatpush1.bf16.msra.mxu0 %v232
    %266 = vmatprep.subr.bf16.mxu0 0
    %267 = vmatpush1.bf16.msra.mxu0 %v233
    %268 = vmatprep.subr.bf16.mxu0 0
    %269 = vmatpush1.bf16.msra.mxu0 %v234
    %270 = vmatprep.subr.bf16.mxu0 0
    %271 = vmatpush1.bf16.msra.mxu0 %v235
    %272 = vmatprep.subr.bf16.mxu0 0
    %273 = vmatpush1.bf16.msra.mxu0 %v236
    %274 = vmatprep.subr.bf16.mxu0 0
    %275 = vmatpush1.bf16.msra.mxu0 %v237
    %276 = vmatprep.subr.bf16.mxu0 0
    %277 = vmatpush1.bf16.msra.mxu0 %v238
    %278 = vmatprep.subr.bf16.mxu0 0
    %279 = vmatpush1.bf16.msra.mxu0 %v239
    %280 = vmatprep.subr.bf16.mxu0 0
    %281 = vmatpush1.bf16.msra.mxu0 %v240
    %282 = vmatprep.subr.bf16.mxu0 0
    %283 = vmatpush1.bf16.msra.mxu0 %v241
    %284 = vmatprep.subr.bf16.mxu0 0
    %285 = vmatpush1.bf16.msra.mxu0 %v242
    %286 = vmatprep.subr.bf16.mxu0 0
    %287 = vmatpush1.bf16.msra.mxu0 %v243
    %288 = vmatprep.subr.bf16.mxu0 0
    %289 = vmatpush1.bf16.msra.mxu0 %v244
    %290 = vmatprep.subr.bf16.mxu0 0
    %291 = vmatpush1.bf16.msra.mxu0 %v245
    %292 = vmatprep.subr.bf16.mxu0 0
    %293 = vmatpush1.bf16.msra.mxu0 %v246
    %294 = vmatprep.subr.bf16.mxu0 0
    %295 = vmatpush1.bf16.msra.mxu0 %v247
    %296 = vmatprep.mubr.bf16.mxu0 %v73
    %297 = vmatmul.mubr.bf16.gmra.mrb[0].mxu0 %v72
    %v298 = vpop.f32.mrb[0].mxu0
    %v299 = vadd.f32 0.0, %v298
    %v300 = vpop.f32.mrb[0].mxu0
    %v301 = vpop.f32.mrb[0].mxu0
    %v302 = vadd.f32 0.0, %v301
    %v303 = vpop.f32.mrb[0].mxu0
    %304 = vmatprep.mubr.bf16.mxu0 %v75
    %305 = vmatmul.mubr.bf16.gmra.mrb[0].mxu0 %v74
    %v306 = vpop.f32.mrb[0].mxu0
    %v307 = vadd.f32 0.0, %v306
    %v308 = vpop.f32.mrb[0].mxu0
    %v309 = vpop.f32.mrb[0].mxu0
    %v310 = vadd.f32 0.0, %v309
    %v311 = vpop.f32.mrb[0].mxu0
    %312 = vmatprep.mubr.bf16.mxu0 %v77
    %313 = vmatmul.mubr.bf16.gmra.mrb[0].mxu0 %v76
    %v314 = vpop.f32.mrb[0].mxu0
    %v315 = vadd.f32 0.0, %v314
    %v316 = vpop.f32.mrb[0].mxu0
    %v317 = vpop.f32.mrb[0].mxu0
    %v318 = vadd.f32 0.0, %v317
    %v319 = vpop.f32.mrb[0].mxu0
    %320 = vmatprep.mubr.bf16.mxu0 %v79
    %321 = vmatmul.mubr.bf16.gmra.mrb[0].mxu0 %v78
    %v322 = vpop.f32.mrb[0].mxu0
    %v323 = vadd.f32 0.0, %v322
    %v324 = vpop.f32.mrb[0].mxu0
    %v325 = vpop.f32.mrb[0].mxu0
    %v326 = vadd.f32 0.0, %v325
    %v327 = vpop.f32.mrb[0].mxu0
    %328 = vmatprep.mubr.bf16.mxu0 %v81
    %329 = vmatmul.mubr.bf16.gmra.mrb[0].mxu0 %v80
    %v330 = vpop.f32.mrb[0].mxu0
    %v331 = vadd.f32 0.0, %v330
    %v332 = vpop.f32.mrb[0].mxu0
    %v333 = vpop.f32.mrb[0].mxu0
    %v334 = vadd.f32 0.0, %v333
    %v335 = vpop.f32.mrb[0].mxu0
    %336 = vmatprep.mubr.bf16.mxu0 %v83
    %337 = vmatmul.mubr.bf16.gmra.mrb[0].mxu0 %v82
    %v338 = vpop.f32.mrb[0].mxu0
    %v339 = vadd.f32 0.0, %v338
    %v340 = vpop.f32.mrb[0].mxu0
    %v341 = vpop.f32.mrb[0].mxu0
    %v342 = vadd.f32 0.0, %v341
    %v343 = vpop.f32.mrb[0].mxu0
    %344 = vmatprep.mubr.bf16.mxu0 %v85
    %345 = vmatmul.mubr.bf16.gmra.mrb[0].mxu0 %v84
    %v346 = vpop.f32.mrb[0].mxu0
    %v347 = vadd.f32 0.0, %v346
    %v348 = vpop.f32.mrb[0].mxu0
    %v349 = vpop.f32.mrb[0].mxu0
    %v350 = vadd.f32 0.0, %v349
    %v351 = vpop.f32.mrb[0].mxu0
    %352 = vmatprep.mubr.bf16.mxu0 %v87
    %353 = vmatmul.mubr.bf16.gmra.mrb[0].mxu0 %v86
    %v354 = vpop.f32.mrb[0].mxu0
    %v355 = vadd.f32 0.0, %v354
    %v356 = vpop.f32.mrb[0].mxu0
    %v357 = vpop.f32.mrb[0].mxu0
    %v358 = vadd.f32 0.0, %v357
    %v359 = vpop.f32.mrb[0].mxu0
    %360 = vmatprep.mubr.bf16.mxu0 %v89
    %361 = vmatmul.mubr.bf16.gmra.mrb[0].mxu0 %v88
    %v362 = vpop.f32.mrb[0].mxu0
    %v363 = vadd.f32 0.0, %v362
    %v364 = vpop.f32.mrb[0].mxu0
    %v365 = vpop.f32.mrb[0].mxu0
    %v366 = vadd.f32 0.0, %v365
    %v367 = vpop.f32.mrb[0].mxu0
    %368 = vmatprep.mubr.bf16.mxu0 %v91
    %369 = vmatmul.mubr.bf16.gmra.mrb[0].mxu0 %v90
    %v370 = vpop.f32.mrb[0].mxu0
    %v371 = vadd.f32 0.0, %v370
    %v372 = vpop.f32.mrb[0].mxu0
    %v373 = vpop.f32.mrb[0].mxu0
    %v374 = vadd.f32 0.0, %v373
    %v375 = vpop.f32.mrb[0].mxu0
    %376 = vmatprep.mubr.bf16.mxu0 %v93
    %377 = vmatmul.mubr.bf16.gmra.mrb[0].mxu0 %v92
    %v378 = vpop.f32.mrb[0].mxu0
    %v379 = vadd.f32 0.0, %v378
    %v380 = vpop.f32.mrb[0].mxu0
    %v381 = vpop.f32.mrb[0].mxu0
    %v382 = vadd.f32 0.0, %v381
    %v383 = vpop.f32.mrb[0].mxu0
    %384 = vmatprep.mubr.bf16.mxu0 %v95
    %385 = vmatmul.mubr.bf16.gmra.mrb[0].mxu0 %v94
    %v386 = vpop.f32.mrb[0].mxu0
    %v387 = vadd.f32 0.0, %v386
    %v388 = vpop.f32.mrb[0].mxu0
    %v389 = vpop.f32.mrb[0].mxu0
    %v390 = vadd.f32 0.0, %v389
    %v391 = vpop.f32.mrb[0].mxu0
    %392 = vmatprep.mubr.bf16.mxu0 %v97
    %393 = vmatmul.mubr.bf16.gmra.mrb[0].mxu0 %v96
    %v394 = vpop.f32.mrb[0].mxu0
    %v395 = vadd.f32 0.0, %v394
    %v396 = vpop.f32.mrb[0].mxu0
    %v397 = vpop.f32.mrb[0].mxu0
    %v398 = vadd.f32 0.0, %v397
    %v399 = vpop.f32.mrb[0].mxu0
    %400 = vmatprep.mubr.bf16.mxu0 %v99
    %401 = vmatmul.mubr.bf16.gmra.mrb[0].mxu0 %v98
    %v402 = vpop.f32.mrb[0].mxu0
    %v403 = vadd.f32 0.0, %v402
    %v404 = vpop.f32.mrb[0].mxu0
    %v405 = vpop.f32.mrb[0].mxu0
    %v406 = vadd.f32 0.0, %v405
    %v407 = vpop.f32.mrb[0].mxu0
    %408 = vmatprep.mubr.bf16.mxu0 %v101
    %409 = vmatmul.mubr.bf16.gmra.mrb[0].mxu0 %v100
    %v410 = vpop.f32.mrb[0].mxu0
    %v411 = vadd.f32 0.0, %v410
    %v412 = vpop.f32.mrb[0].mxu0
    %v413 = vpop.f32.mrb[0].mxu0
    %v414 = vadd.f32 0.0, %v413
    %v415 = vpop.f32.mrb[0].mxu0
    %416 = vmatprep.mubr.bf16.mxu0 %v103
    %417 = vmatmul.mubr.bf16.gmra.mrb[0].mxu0 %v102
    %v418 = vpop.f32.mrb[0].mxu0
    %v419 = vadd.f32 0.0, %v418
    %v420 = vpop.f32.mrb[0].mxu0
    %v421 = vpop.f32.mrb[0].mxu0
    %v422 = vadd.f32 0.0, %v421
    %v423 = vpop.f32.mrb[0].mxu0
    %424 = vdwg.mxu0
    %426 = vset.pattern.permute.xlu0 0
    %427 = vperm.xlu0 %426, %v104
    %v428 = vpop.permute.xlu0 %427
    %431 = vset.pattern.permute.xlu0 0
    %432 = vperm.xlu0 %431, %v105
    %v433 = vpop.permute.xlu0 %432
    %436 = vset.pattern.permute.xlu0 0
    %437 = vperm.xlu0 %436, %v106
    %v438 = vpop.permute.xlu0 %437
    %441 = vset.pattern.permute.xlu0 0
    %442 = vperm.xlu0 %441, %v107
    %v443 = vpop.permute.xlu0 %442
    %446 = vset.pattern.permute.xlu0 0
    %447 = vperm.xlu0 %446, %v108
    %v448 = vpop.permute.xlu0 %447
    %451 = vset.pattern.permute.xlu0 0
    %452 = vperm.xlu0 %451, %v109
    %v453 = vpop.permute.xlu0 %452
    %456 = vset.pattern.permute.xlu0 0
    %457 = vperm.xlu0 %456, %v110
    %v458 = vpop.permute.xlu0 %457
    %461 = vset.pattern.permute.xlu0 0
    %462 = vperm.xlu0 %461, %v111
    %v463 = vpop.permute.xlu0 %462
    %466 = vset.pattern.permute.xlu0 0
    %467 = vperm.xlu0 %466, %v112
    %v468 = vpop.permute.xlu0 %467
    %471 = vset.pattern.permute.xlu0 0
    %472 = vperm.xlu0 %471, %v113
    %v473 = vpop.permute.xlu0 %472
    %476 = vset.pattern.permute.xlu0 0
    %477 = vperm.xlu0 %476, %v114
    %v478 = vpop.permute.xlu0 %477
    %481 = vset.pattern.permute.xlu0 0
    %482 = vperm.xlu0 %481, %v115
    %v483 = vpop.permute.xlu0 %482
    %486 = vset.pattern.permute.xlu0 0
    %487 = vperm.xlu0 %486, %v116
    %v488 = vpop.permute.xlu0 %487
    %491 = vset.pattern.permute.xlu0 0
    %492 = vperm.xlu0 %491, %v117
    %v493 = vpop.permute.xlu0 %492
    %496 = vset.pattern.permute.xlu0 0
    %497 = vperm.xlu0 %496, %v118
    %v498 = vpop.permute.xlu0 %497
    %501 = vset.pattern.permute.xlu0 0
    %502 = vperm.xlu0 %501, %v119
    %v503 = vpop.permute.xlu0 %502
    %506 = vset.pattern.permute.xlu0 0
    %507 = vperm.xlu0 %506, %v120
    %v508 = vpop.permute.xlu0 %507
    %511 = vset.pattern.permute.xlu0 0
    %512 = vperm.xlu0 %511, %v121
    %v513 = vpop.permute.xlu0 %512
    %516 = vset.pattern.permute.xlu0 0
    %517 = vperm.xlu0 %516, %v122
    %v518 = vpop.permute.xlu0 %517
    %521 = vset.pattern.permute.xlu0 0
    %522 = vperm.xlu0 %521, %v123
    %v523 = vpop.permute.xlu0 %522
    %526 = vset.pattern.permute.xlu0 0
    %527 = vperm.xlu0 %526, %v124
    %v528 = vpop.permute.xlu0 %527
    %531 = vset.pattern.permute.xlu0 0
    %532 = vperm.xlu0 %531, %v125
    %v533 = vpop.permute.xlu0 %532
    %536 = vset.pattern.permute.xlu0 0
    %537 = vperm.xlu0 %536, %v126
    %v538 = vpop.permute.xlu0 %537
    %541 = vset.pattern.permute.xlu0 0
    %542 = vperm.xlu0 %541, %v127
    %v543 = vpop.permute.xlu0 %542
    %546 = vset.pattern.permute.xlu0 0
    %547 = vperm.xlu0 %546, %v128
    %v548 = vpop.permute.xlu0 %547
    %551 = vset.pattern.permute.xlu0 0
    %552 = vperm.xlu0 %551, %v129
    %v553 = vpop.permute.xlu0 %552
    %556 = vset.pattern.permute.xlu0 0
    %557 = vperm.xlu0 %556, %v130
    %v558 = vpop.permute.xlu0 %557
    %561 = vset.pattern.permute.xlu0 0
    %562 = vperm.xlu0 %561, %v131
    %v563 = vpop.permute.xlu0 %562
    %566 = vset.pattern.permute.xlu0 0
    %567 = vperm.xlu0 %566, %v132
    %v568 = vpop.permute.xlu0 %567
    %571 = vset.pattern.permute.xlu0 0
    %572 = vperm.xlu0 %571, %v133
    %v573 = vpop.permute.xlu0 %572
    %576 = vset.pattern.permute.xlu0 0
    %577 = vperm.xlu0 %576, %v134
    %v578 = vpop.permute.xlu0 %577
    %581 = vset.pattern.permute.xlu0 0
    %582 = vperm.xlu0 %581, %v135
    %v583 = vpop.permute.xlu0 %582
    %v585 = vmul.f32 %v299, %v428
    %v586 = vmul.f32 %v302, %v433
    %v587 = vmul.f32 %v307, %v438
    %v588 = vmul.f32 %v310, %v443
    %v589 = vmul.f32 %v315, %v448
    %v590 = vmul.f32 %v318, %v453
    %v591 = vmul.f32 %v323, %v458
    %v592 = vmul.f32 %v326, %v463
    %v593 = vmul.f32 %v331, %v468
    %v594 = vmul.f32 %v334, %v473
    %v595 = vmul.f32 %v339, %v478
    %v596 = vmul.f32 %v342, %v483
    %v597 = vmul.f32 %v347, %v488
    %v598 = vmul.f32 %v350, %v493
    %v599 = vmul.f32 %v355, %v498
    %v600 = vmul.f32 %v358, %v503
    %v601 = vmul.f32 %v363, %v508
    %v602 = vmul.f32 %v366, %v513
    %v603 = vmul.f32 %v371, %v518
    %v604 = vmul.f32 %v374, %v523
    %v605 = vmul.f32 %v379, %v528
    %v606 = vmul.f32 %v382, %v533
    %v607 = vmul.f32 %v387, %v538
    %v608 = vmul.f32 %v390, %v543
    %v609 = vmul.f32 %v395, %v548
    %v610 = vmul.f32 %v398, %v553
    %v611 = vmul.f32 %v403, %v558
    %v612 = vmul.f32 %v406, %v563
    %v613 = vmul.f32 %v411, %v568
    %v614 = vmul.f32 %v414, %v573
    %v615 = vmul.f32 %v419, %v578
    %v616 = vmul.f32 %v422, %v583
    %v617 = vpack.c.bf16 %v586, %v585
    %v618 = vpack.c.bf16 %v588, %v587
    %v619 = vpack.c.bf16 %v590, %v589
    %v620 = vpack.c.bf16 %v592, %v591
    %v621 = vpack.c.bf16 %v594, %v593
    %v622 = vpack.c.bf16 %v596, %v595
    %v623 = vpack.c.bf16 %v598, %v597
    %v624 = vpack.c.bf16 %v600, %v599
    %v625 = vpack.c.bf16 %v602, %v601
    %v626 = vpack.c.bf16 %v604, %v603
    %v627 = vpack.c.bf16 %v606, %v605
    %v628 = vpack.c.bf16 %v608, %v607
    %v629 = vpack.c.bf16 %v610, %v609
    %v630 = vpack.c.bf16 %v612, %v611
    %v631 = vpack.c.bf16 %v614, %v613
    %v632 = vpack.c.bf16 %v616, %v615
    %v633 = vld [vmem:[#allocation2] sm:$0xf]
    %v634 = vld [vmem:[#allocation2 + $0x4] sm:$0xf]
    %v635 = vld [vmem:[#allocation2 + $0x8] sm:$0xf]
    %v636 = vld [vmem:[#allocation2 + $0xc] sm:$0xf]
    %v637 = vld [vmem:[#allocation2 + $0x10] sm:$0xf]
    %v638 = vld [vmem:[#allocation2 + $0x14] sm:$0xf]
    %v639 = vld [vmem:[#allocation2 + $0x18] sm:$0xf]
    %v640 = vld [vmem:[#allocation2 + $0x1c] sm:$0xf]
    %v641 = vld [vmem:[#allocation2 + $0x20] sm:$0xf]
    %v642 = vld [vmem:[#allocation2 + $0x24] sm:$0xf]
    %v643 = vld [vmem:[#allocation2 + $0x28] sm:$0xf]
    %v644 = vld [vmem:[#allocation2 + $0x2c] sm:$0xf]
    %v645 = vld [vmem:[#allocation2 + $0x30] sm:$0xf]
    %v646 = vld [vmem:[#allocation2 + $0x34] sm:$0xf]
    %v647 = vld [vmem:[#allocation2 + $0x38] sm:$0xf]
    %v648 = vld [vmem:[#allocation2 + $0x3c] sm:$0xf]
    %v649 = vld [vmem:[#allocation2 + $0x40] sm:$0xf]
    %v650 = vld [vmem:[#allocation2 + $0x44] sm:$0xf]
    %v651 = vld [vmem:[#allocation2 + $0x48] sm:$0xf]
    %v652 = vld [vmem:[#allocation2 + $0x4c] sm:$0xf]
    %v653 = vld [vmem:[#allocation2 + $0x50] sm:$0xf]
    %v654 = vld [vmem:[#allocation2 + $0x54] sm:$0xf]
    %v655 = vld [vmem:[#allocation2 + $0x58] sm:$0xf]
    %v656 = vld [vmem:[#allocation2 + $0x5c] sm:$0xf]
    %v657 = vld [vmem:[#allocation2 + $0x60] sm:$0xf]
    %v658 = vld [vmem:[#allocation2 + $0x64] sm:$0xf]
    %v659 = vld [vmem:[#allocation2 + $0x68] sm:$0xf]
    %v660 = vld [vmem:[#allocation2 + $0x6c] sm:$0xf]
    %v661 = vld [vmem:[#allocation2 + $0x70] sm:$0xf]
    %v662 = vld [vmem:[#allocation2 + $0x74] sm:$0xf]
    %v663 = vld [vmem:[#allocation2 + $0x78] sm:$0xf]
    %v664 = vld [vmem:[#allocation2 + $0x7c] sm:$0xf]
    %v665 = vld [vmem:[%s4] sm:$0x1]
    %v667 = vlaneseq
    %v668 = vshrl.u32 %v667, 7
    %v669 = vsub.s32 0, %v668
    %v670 = vrot.slane %v665, %v669
    %v704 = vunpack.c.l.b16 %v633
    %v705 = vunpack.c.l.b16 %v634
    %v706 = vunpack.c.l.b16 %v635
    %v707 = vunpack.c.l.b16 %v636
    %v708 = vunpack.c.l.b16 %v637
    %v709 = vunpack.c.l.b16 %v638
    %v710 = vunpack.c.l.b16 %v639
    %v711 = vunpack.c.l.b16 %v640
    %v712 = vunpack.c.l.b16 %v641
    %v713 = vunpack.c.l.b16 %v642
    %v714 = vunpack.c.l.b16 %v643
    %v715 = vunpack.c.l.b16 %v644
    %v716 = vunpack.c.l.b16 %v645
    %v717 = vunpack.c.l.b16 %v646
    %v718 = vunpack.c.l.b16 %v647
    %v719 = vunpack.c.l.b16 %v648
    %v720 = vunpack.c.l.b16 %v649
    %v721 = vunpack.c.l.b16 %v650
    %v722 = vunpack.c.l.b16 %v651
    %v723 = vunpack.c.l.b16 %v652
    %v724 = vunpack.c.l.b16 %v653
    %v725 = vunpack.c.l.b16 %v654
    %v726 = vunpack.c.l.b16 %v655
    %v727 = vunpack.c.l.b16 %v656
    %v728 = vunpack.c.l.b16 %v657
    %v729 = vunpack.c.l.b16 %v658
    %v730 = vunpack.c.l.b16 %v659
    %v731 = vunpack.c.l.b16 %v660
    %v732 = vunpack.c.l.b16 %v661
    %v733 = vunpack.c.l.b16 %v662
    %v734 = vunpack.c.l.b16 %v663
    %v735 = vunpack.c.l.b16 %v664
    %v736 = vpack.c.b16 %v705, %v704
    %v737 = vpack.c.b16 %v707, %v706
    %v738 = vpack.c.b16 %v709, %v708
    %v739 = vpack.c.b16 %v711, %v710
    %v740 = vpack.c.b16 %v713, %v712
    %v741 = vpack.c.b16 %v715, %v714
    %v742 = vpack.c.b16 %v717, %v716
    %v743 = vpack.c.b16 %v719, %v718
    %v744 = vpack.c.b16 %v721, %v720
    %v745 = vpack.c.b16 %v723, %v722
    %v746 = vpack.c.b16 %v725, %v724
    %v747 = vpack.c.b16 %v727, %v726
    %v748 = vpack.c.b16 %v729, %v728
    %v749 = vpack.c.b16 %v731, %v730
    %v750 = vpack.c.b16 %v733, %v732
    %v751 = vpack.c.b16 %v735, %v734
    %768 = vmatprep.subr.bf16.mxu0 0
    %769 = vmatpush1.bf16.msra.mxu0 %v736
    %770 = vmatprep.subr.bf16.mxu0 0
    %771 = vmatpush1.bf16.msra.mxu0 %v737
    %772 = vmatprep.subr.bf16.mxu0 0
    %773 = vmatpush1.bf16.msra.mxu0 %v738
    %774 = vmatprep.subr.bf16.mxu0 0
    %775 = vmatpush1.bf16.msra.mxu0 %v739
    %776 = vmatprep.subr.bf16.mxu0 0
    %777 = vmatpush1.bf16.msra.mxu0 %v740
    %778 = vmatprep.subr.bf16.mxu0 0
    %779 = vmatpush1.bf16.msra.mxu0 %v741
    %780 = vmatprep.subr.bf16.mxu0 0
    %781 = vmatpush1.bf16.msra.mxu0 %v742
    %782 = vmatprep.subr.bf16.mxu0 0
    %783 = vmatpush1.bf16.msra.mxu0 %v743
    %784 = vmatprep.subr.bf16.mxu0 0
    %785 = vmatpush1.bf16.msra.mxu0 %v744
    %786 = vmatprep.subr.bf16.mxu0 0
    %787 = vmatpush1.bf16.msra.mxu0 %v745
    %788 = vmatprep.subr.bf16.mxu0 0
    %789 = vmatpush1.bf16.msra.mxu0 %v746
    %790 = vmatprep.subr.bf16.mxu0 0
    %791 = vmatpush1.bf16.msra.mxu0 %v747
    %792 = vmatprep.subr.bf16.mxu0 0
    %793 = vmatpush1.bf16.msra.mxu0 %v748
    %794 = vmatprep.subr.bf16.mxu0 0
    %795 = vmatpush1.bf16.msra.mxu0 %v749
    %796 = vmatprep.subr.bf16.mxu0 0
    %797 = vmatpush1.bf16.msra.mxu0 %v750
    %798 = vmatprep.subr.bf16.mxu0 0
    %799 = vmatpush1.bf16.msra.mxu0 %v751
    %800 = vmatprep.mubr.bf16.mxu0 %v232
    %801 = vmatmul.mubr.bf16.gmra.mrb[0].mxu0 %v617
    %v802 = vpop.f32.mrb[0].mxu0
    %v803 = vadd.f32 %v670, %v802
    %v804 = vpop.f32.mrb[0].mxu0
    %v805 = vpop.f32.mrb[0].mxu0
    %v806 = vadd.f32 %v670, %v805
    %v807 = vpop.f32.mrb[0].mxu0
    %808 = vmatprep.mubr.bf16.mxu0 %v233
    %809 = vmatmul.mubr.bf16.gmra.mrb[0].mxu0 %v618
    %v810 = vpop.f32.mrb[0].mxu0
    %v811 = vadd.f32 %v670, %v810
    %v812 = vpop.f32.mrb[0].mxu0
    %v813 = vpop.f32.mrb[0].mxu0
    %v814 = vadd.f32 %v670, %v813
    %v815 = vpop.f32.mrb[0].mxu0
    %816 = vmatprep.mubr.bf16.mxu0 %v234
    %817 = vmatmul.mubr.bf16.gmra.mrb[0].mxu0 %v619
    %v818 = vpop.f32.mrb[0].mxu0
    %v819 = vadd.f32 %v670, %v818
    %v820 = vpop.f32.mrb[0].mxu0
    %v821 = vpop.f32.mrb[0].mxu0
    %v822 = vadd.f32 %v670, %v821
    %v823 = vpop.f32.mrb[0].mxu0
    %824 = vmatprep.mubr.bf16.mxu0 %v235
    %825 = vmatmul.mubr.bf16.gmra.mrb[0].mxu0 %v620
    %v826 = vpop.f32.mrb[0].mxu0
    %v827 = vadd.f32 %v670, %v826
    %v828 = vpop.f32.mrb[0].mxu0
    %v829 = vpop.f32.mrb[0].mxu0
    %v830 = vadd.f32 %v670, %v829
    %v831 = vpop.f32.mrb[0].mxu0
    %832 = vmatprep.mubr.bf16.mxu0 %v236
    %833 = vmatmul.mubr.bf16.gmra.mrb[0].mxu0 %v621
    %v834 = vpop.f32.mrb[0].mxu0
    %v835 = vadd.f32 %v670, %v834
    %v836 = vpop.f32.mrb[0].mxu0
    %v837 = vpop.f32.mrb[0].mxu0
    %v838 = vadd.f32 %v670, %v837
    %v839 = vpop.f32.mrb[0].mxu0
    %840 = vmatprep.mubr.bf16.mxu0 %v237
    %841 = vmatmul.mubr.bf16.gmra.mrb[0].mxu0 %v622
    %v842 = vpop.f32.mrb[0].mxu0
    %v843 = vadd.f32 %v670, %v842
    %v844 = vpop.f32.mrb[0].mxu0
    %v845 = vpop.f32.mrb[0].mxu0
    %v846 = vadd.f32 %v670, %v845
    %v847 = vpop.f32.mrb[0].mxu0
    %848 = vmatprep.mubr.bf16.mxu0 %v238
    %849 = vmatmul.mubr.bf16.gmra.mrb[0].mxu0 %v623
    %v850 = vpop.f32.mrb[0].mxu0
    %v851 = vadd.f32 %v670, %v850
    %v852 = vpop.f32.mrb[0].mxu0
    %v853 = vpop.f32.mrb[0].mxu0
    %v854 = vadd.f32 %v670, %v853
    %v855 = vpop.f32.mrb[0].mxu0
    %856 = vmatprep.mubr.bf16.mxu0 %v239
    %857 = vmatmul.mubr.bf16.gmra.mrb[0].mxu0 %v624
    %v858 = vpop.f32.mrb[0].mxu0
    %v859 = vadd.f32 %v670, %v858
    %v860 = vpop.f32.mrb[0].mxu0
    %v861 = vpop.f32.mrb[0].mxu0
    %v862 = vadd.f32 %v670, %v861
    %v863 = vpop.f32.mrb[0].mxu0
    %864 = vmatprep.mubr.bf16.mxu0 %v240
    %865 = vmatmul.mubr.bf16.gmra.mrb[0].mxu0 %v625
    %v866 = vpop.f32.mrb[0].mxu0
    %v867 = vadd.f32 %v670, %v866
    %v868 = vpop.f32.mrb[0].mxu0
    %v869 = vpop.f32.mrb[0].mxu0
    %v870 = vadd.f32 %v670, %v869
    %v871 = vpop.f32.mrb[0].mxu0
    %872 = vmatprep.mubr.bf16.mxu0 %v241
    %873 = vmatmul.mubr.bf16.gmra.mrb[0].mxu0 %v626
    %v874 = vpop.f32.mrb[0].mxu0
    %v875 = vadd.f32 %v670, %v874
    %v876 = vpop.f32.mrb[0].mxu0
    %v877 = vpop.f32.mrb[0].mxu0
    %v878 = vadd.f32 %v670, %v877
    %v879 = vpop.f32.mrb[0].mxu0
    %880 = vmatprep.mubr.bf16.mxu0 %v242
    %881 = vmatmul.mubr.bf16.gmra.mrb[0].mxu0 %v627
    %v882 = vpop.f32.mrb[0].mxu0
    %v883 = vadd.f32 %v670, %v882
    %v884 = vpop.f32.mrb[0].mxu0
    %v885 = vpop.f32.mrb[0].mxu0
    %v886 = vadd.f32 %v670, %v885
    %v887 = vpop.f32.mrb[0].mxu0
    %888 = vmatprep.mubr.bf16.mxu0 %v243
    %889 = vmatmul.mubr.bf16.gmra.mrb[0].mxu0 %v628
    %v890 = vpop.f32.mrb[0].mxu0
    %v891 = vadd.f32 %v670, %v890
    %v892 = vpop.f32.mrb[0].mxu0
    %v893 = vpop.f32.mrb[0].mxu0
    %v894 = vadd.f32 %v670, %v893
    %v895 = vpop.f32.mrb[0].mxu0
    %896 = vmatprep.mubr.bf16.mxu0 %v244
    %897 = vmatmul.mubr.bf16.gmra.mrb[0].mxu0 %v629
    %v898 = vpop.f32.mrb[0].mxu0
    %v899 = vadd.f32 %v670, %v898
    %v900 = vpop.f32.mrb[0].mxu0
    %v901 = vpop.f32.mrb[0].mxu0
    %v902 = vadd.f32 %v670, %v901
    %v903 = vpop.f32.mrb[0].mxu0
    %904 = vmatprep.mubr.bf16.mxu0 %v245
    %905 = vmatmul.mubr.bf16.gmra.mrb[0].mxu0 %v630
    %v906 = vpop.f32.mrb[0].mxu0
    %v907 = vadd.f32 %v670, %v906
    %v908 = vpop.f32.mrb[0].mxu0
    %v909 = vpop.f32.mrb[0].mxu0
    %v910 = vadd.f32 %v670, %v909
    %v911 = vpop.f32.mrb[0].mxu0
    %912 = vmatprep.mubr.bf16.mxu0 %v246
    %913 = vmatmul.mubr.bf16.gmra.mrb[0].mxu0 %v631
    %v914 = vpop.f32.mrb[0].mxu0
    %v915 = vadd.f32 %v670, %v914
    %v916 = vpop.f32.mrb[0].mxu0
    %v917 = vpop.f32.mrb[0].mxu0
    %v918 = vadd.f32 %v670, %v917
    %v919 = vpop.f32.mrb[0].mxu0
    %920 = vmatprep.mubr.bf16.mxu0 %v247
    %921 = vmatmul.mubr.bf16.gmra.mrb[0].mxu0 %v632
    %v922 = vpop.f32.mrb[0].mxu0
    %v923 = vadd.f32 %v670, %v922
    %v924 = vpop.f32.mrb[0].mxu0
    %v925 = vpop.f32.mrb[0].mxu0
    %v926 = vadd.f32 %v670, %v925
    %v927 = vpop.f32.mrb[0].mxu0
    %928 = vdwg.mxu0
    %v929 = vmax.f32 %v803, 0.0
    %v930 = vmax.f32 %v806, 0.0
    %v931 = vmax.f32 %v811, 0.0
    %v932 = vmax.f32 %v814, 0.0
    %v933 = vmax.f32 %v819, 0.0
    %v934 = vmax.f32 %v822, 0.0
    %v935 = vmax.f32 %v827, 0.0
    %v936 = vmax.f32 %v830, 0.0
    %v937 = vmax.f32 %v835, 0.0
    %v938 = vmax.f32 %v838, 0.0
    %v939 = vmax.f32 %v843, 0.0
    %v940 = vmax.f32 %v846, 0.0
    %v941 = vmax.f32 %v851, 0.0
    %v942 = vmax.f32 %v854, 0.0
    %v943 = vmax.f32 %v859, 0.0
    %v944 = vmax.f32 %v862, 0.0
    %v945 = vmax.f32 %v867, 0.0
    %v946 = vmax.f32 %v870, 0.0
    %v947 = vmax.f32 %v875, 0.0
    %v948 = vmax.f32 %v878, 0.0
    %v949 = vmax.f32 %v883, 0.0
    %v950 = vmax.f32 %v886, 0.0
    %v951 = vmax.f32 %v891, 0.0
    %v952 = vmax.f32 %v894, 0.0
    %v953 = vmax.f32 %v899, 0.0
    %v954 = vmax.f32 %v902, 0.0
    %v955 = vmax.f32 %v907, 0.0
    %v956 = vmax.f32 %v910, 0.0
    %v957 = vmax.f32 %v915, 0.0
    %v958 = vmax.f32 %v918, 0.0
    %v959 = vmax.f32 %v923, 0.0
    %v960 = vmax.f32 %v926, 0.0
    %v961 = vpack.c.bf16 %v930, %v929
    %v962 = vpack.c.bf16 %v932, %v931
    %v963 = vpack.c.bf16 %v934, %v933
    %v964 = vpack.c.bf16 %v936, %v935
    %v965 = vpack.c.bf16 %v938, %v937
    %v966 = vpack.c.bf16 %v940, %v939
    %v967 = vpack.c.bf16 %v942, %v941
    %v968 = vpack.c.bf16 %v944, %v943
    %v969 = vpack.c.bf16 %v946, %v945
    %v970 = vpack.c.bf16 %v948, %v947
    %v971 = vpack.c.bf16 %v950, %v949
    %v972 = vpack.c.bf16 %v952, %v951
    %v973 = vpack.c.bf16 %v954, %v953
    %v974 = vpack.c.bf16 %v956, %v955
    %v975 = vpack.c.bf16 %v958, %v957
    %v976 = vpack.c.bf16 %v960, %v959
    %v977 = vld [vmem:[#allocation5] sm:$0xff]
    %v978 = vld [vmem:[#allocation5 + $0x8] sm:$0xff]
    %v979 = vld [vmem:[#allocation5 + $0x10] sm:$0xff]
    %v980 = vld [vmem:[#allocation5 + $0x18] sm:$0xff]
    %v981 = vld [vmem:[#allocation5 + $0x20] sm:$0xff]
    %v982 = vld [vmem:[#allocation5 + $0x28] sm:$0xff]
    %v983 = vld [vmem:[#allocation5 + $0x30] sm:$0xff]
    %v984 = vld [vmem:[#allocation5 + $0x38] sm:$0xff]
    %v985 = vld [vmem:[#allocation5 + $0x40] sm:$0xff]
    %v986 = vld [vmem:[#allocation5 + $0x48] sm:$0xff]
    %v987 = vld [vmem:[#allocation5 + $0x50] sm:$0xff]
    %v988 = vld [vmem:[#allocation5 + $0x58] sm:$0xff]
    %v989 = vld [vmem:[#allocation5 + $0x60] sm:$0xff]
    %v990 = vld [vmem:[#allocation5 + $0x68] sm:$0xff]
    %v991 = vld [vmem:[#allocation5 + $0x70] sm:$0xff]
    %v992 = vld [vmem:[#allocation5 + $0x78] sm:$0xff]
    %v1009 = vunpack.c.l.b16 %v977
    %v1010 = vunpack.c.h.b16 %v977
    %v1011 = vunpack.c.l.b16 %v978
    %v1012 = vunpack.c.h.b16 %v978
    %v1013 = vunpack.c.l.b16 %v979
    %v1014 = vunpack.c.h.b16 %v979
    %v1015 = vunpack.c.l.b16 %v980
    %v1016 = vunpack.c.h.b16 %v980
    %v1017 = vunpack.c.l.b16 %v981
    %v1018 = vunpack.c.h.b16 %v981
    %v1019 = vunpack.c.l.b16 %v982
    %v1020 = vunpack.c.h.b16 %v982
    %v1021 = vunpack.c.l.b16 %v983
    %v1022 = vunpack.c.h.b16 %v983
    %v1023 = vunpack.c.l.b16 %v984
    %v1024 = vunpack.c.h.b16 %v984
    %v1025 = vunpack.c.l.b16 %v985
    %v1026 = vunpack.c.h.b16 %v985
    %v1027 = vunpack.c.l.b16 %v986
    %v1028 = vunpack.c.h.b16 %v986
    %v1029 = vunpack.c.l.b16 %v987
    %v1030 = vunpack.c.h.b16 %v987
    %v1031 = vunpack.c.l.b16 %v988
    %v1032 = vunpack.c.h.b16 %v988
    %v1033 = vunpack.c.l.b16 %v989
    %v1034 = vunpack.c.h.b16 %v989
    %v1035 = vunpack.c.l.b16 %v990
    %v1036 = vunpack.c.h.b16 %v990
    %v1037 = vunpack.c.l.b16 %v991
    %v1038 = vunpack.c.h.b16 %v991
    %v1039 = vunpack.c.l.b16 %v992
    %v1040 = vunpack.c.h.b16 %v992
    %v1041 = vpack.c.b16 %v1011, %v1009
    %v1042 = vpack.c.b16 %v1012, %v1010
    %v1043 = vpack.c.b16 %v1015, %v1013
    %v1044 = vpack.c.b16 %v1016, %v1014
    %v1045 = vpack.c.b16 %v1019, %v1017
    %v1046 = vpack.c.b16 %v1020, %v1018
    %v1047 = vpack.c.b16 %v1023, %v1021
    %v1048 = vpack.c.b16 %v1024, %v1022
    %v1049 = vpack.c.b16 %v1027, %v1025
    %v1050 = vpack.c.b16 %v1028, %v1026
    %v1051 = vpack.c.b16 %v1031, %v1029
    %v1052 = vpack.c.b16 %v1032, %v1030
    %v1053 = vpack.c.b16 %v1035, %v1033
    %v1054 = vpack.c.b16 %v1036, %v1034
    %v1055 = vpack.c.b16 %v1039, %v1037
    %v1056 = vpack.c.b16 %v1040, %v1038
    %1073 = vmatprep.subr.bf16.mxu0 %v1042
    %1074 = vmatpush1.bf16.msra.mxu0 %v1041
    %1075 = vmatprep.subr.bf16.mxu0 %v1044
    %1076 = vmatpush1.bf16.msra.mxu0 %v1043
    %1077 = vmatprep.subr.bf16.mxu0 %v1046
    %1078 = vmatpush1.bf16.msra.mxu0 %v1045
    %1079 = vmatprep.subr.bf16.mxu0 %v1048
    %1080 = vmatpush1.bf16.msra.mxu0 %v1047
    %1081 = vmatprep.subr.bf16.mxu0 %v1050
    %1082 = vmatpush1.bf16.msra.mxu0 %v1049
    %1083 = vmatprep.subr.bf16.mxu0 %v1052
    %1084 = vmatpush1.bf16.msra.mxu0 %v1051
    %1085 = vmatprep.subr.bf16.mxu0 %v1054
    %1086 = vmatpush1.bf16.msra.mxu0 %v1053
    %1087 = vmatprep.subr.bf16.mxu0 %v1056
    %1088 = vmatpush1.bf16.msra.mxu0 %v1055
    %1089 = vmatprep.subr.bf16.mxu0 0
    %1090 = vmatpush1.bf16.msra.mxu0 0
    %1091 = vmatprep.subr.bf16.mxu0 0
    %1092 = vmatpush1.bf16.msra.mxu0 0
    %1093 = vmatprep.subr.bf16.mxu0 0
    %1094 = vmatpush1.bf16.msra.mxu0 0
    %1095 = vmatprep.subr.bf16.mxu0 0
    %1096 = vmatpush1.bf16.msra.mxu0 0
    %1097 = vmatprep.subr.bf16.mxu0 0
    %1098 = vmatpush1.bf16.msra.mxu0 0
    %1099 = vmatprep.subr.bf16.mxu0 0
    %1100 = vmatpush1.bf16.msra.mxu0 0
    %1101 = vmatprep.subr.bf16.mxu0 0
    %1102 = vmatpush1.bf16.msra.mxu0 0
    %1103 = vmatprep.subr.bf16.mxu0 0
    %1104 = vmatpush1.bf16.msra.mxu0 0
    %1105 = vmatprep.mubr.bf16.mxu0 0
    %1106 = vmatmul.mubr.bf16.gmra.mrb[0].mxu0 %v961
    %v1107 = vpop.f32.mrb[0].mxu0
    %v1108 = vadd.f32 0.0, %v1107
    %v1109 = vpop.f32.mrb[0].mxu0
    %v1110 = vadd.f32 0.0, %v1109
    %v1111 = vpop.f32.mrb[0].mxu0
    %v1112 = vadd.f32 0.0, %v1111
    %v1113 = vpop.f32.mrb[0].mxu0
    %v1114 = vadd.f32 0.0, %v1113
    %1115 = vmatprep.mubr.bf16.mxu0 0
    %1116 = vmatmul.mubr.bf16.gmra.mrb[0].mxu0 %v962
    %v1117 = vpop.f32.mrb[0].mxu0
    %v1118 = vadd.f32 0.0, %v1117
    %v1119 = vpop.f32.mrb[0].mxu0
    %v1120 = vadd.f32 0.0, %v1119
    %v1121 = vpop.f32.mrb[0].mxu0
    %v1122 = vadd.f32 0.0, %v1121
    %v1123 = vpop.f32.mrb[0].mxu0
    %v1124 = vadd.f32 0.0, %v1123
    %1125 = vmatprep.mubr.bf16.mxu0 0
    %1126 = vmatmul.mubr.bf16.gmra.mrb[0].mxu0 %v963
    %v1127 = vpop.f32.mrb[0].mxu0
    %v1128 = vadd.f32 0.0, %v1127
    %v1129 = vpop.f32.mrb[0].mxu0
    %v1130 = vadd.f32 0.0, %v1129
    %v1131 = vpop.f32.mrb[0].mxu0
    %v1132 = vadd.f32 0.0, %v1131
    %v1133 = vpop.f32.mrb[0].mxu0
    %v1134 = vadd.f32 0.0, %v1133
    %1135 = vmatprep.mubr.bf16.mxu0 0
    %1136 = vmatmul.mubr.bf16.gmra.mrb[0].mxu0 %v964
    %v1137 = vpop.f32.mrb[0].mxu0
    %v1138 = vadd.f32 0.0, %v1137
    %v1139 = vpop.f32.mrb[0].mxu0
    %v1140 = vadd.f32 0.0, %v1139
    %v1141 = vpop.f32.mrb[0].mxu0
    %v1142 = vadd.f32 0.0, %v1141
    %v1143 = vpop.f32.mrb[0].mxu0
    %v1144 = vadd.f32 0.0, %v1143
    %1145 = vmatprep.mubr.bf16.mxu0 0
    %1146 = vmatmul.mubr.bf16.gmra.mrb[0].mxu0 %v965
    %v1147 = vpop.f32.mrb[0].mxu0
    %v1148 = vadd.f32 0.0, %v1147
    %v1149 = vpop.f32.mrb[0].mxu0
    %v1150 = vadd.f32 0.0, %v1149
    %v1151 = vpop.f32.mrb[0].mxu0
    %v1152 = vadd.f32 0.0, %v1151
    %v1153 = vpop.f32.mrb[0].mxu0
    %v1154 = vadd.f32 0.0, %v1153
    %1155 = vmatprep.mubr.bf16.mxu0 0
    %1156 = vmatmul.mubr.bf16.gmra.mrb[0].mxu0 %v966
    %v1157 = vpop.f32.mrb[0].mxu0
    %v1158 = vadd.f32 0.0, %v1157
    %v1159 = vpop.f32.mrb[0].mxu0
    %v1160 = vadd.f32 0.0, %v1159
    %v1161 = vpop.f32.mrb[0].mxu0
    %v1162 = vadd.f32 0.0, %v1161
    %v1163 = vpop.f32.mrb[0].mxu0
    %v1164 = vadd.f32 0.0, %v1163
    %1165 = vmatprep.mubr.bf16.mxu0 0
    %1166 = vmatmul.mubr.bf16.gmra.mrb[0].mxu0 %v967
    %v1167 = vpop.f32.mrb[0].mxu0
    %v1168 = vadd.f32 0.0, %v1167
    %v1169 = vpop.f32.mrb[0].mxu0
    %v1170 = vadd.f32 0.0, %v1169
    %v1171 = vpop.f32.mrb[0].mxu0
    %v1172 = vadd.f32 0.0, %v1171
    %v1173 = vpop.f32.mrb[0].mxu0
    %v1174 = vadd.f32 0.0, %v1173
    %1175 = vmatprep.mubr.bf16.mxu0 0
    %1176 = vmatmul.mubr.bf16.gmra.mrb[0].mxu0 %v968
    %v1177 = vpop.f32.mrb[0].mxu0
    %v1178 = vadd.f32 0.0, %v1177
    %v1179 = vpop.f32.mrb[0].mxu0
    %v1180 = vadd.f32 0.0, %v1179
    %v1181 = vpop.f32.mrb[0].mxu0
    %v1182 = vadd.f32 0.0, %v1181
    %v1183 = vpop.f32.mrb[0].mxu0
    %v1184 = vadd.f32 0.0, %v1183
    %1185 = vmatprep.mubr.bf16.mxu0 0
    %1186 = vmatmul.mubr.bf16.gmra.mrb[0].mxu0 %v969
    %v1187 = vpop.f32.mrb[0].mxu0
    %v1188 = vadd.f32 0.0, %v1187
    %v1189 = vpop.f32.mrb[0].mxu0
    %v1190 = vadd.f32 0.0, %v1189
    %v1191 = vpop.f32.mrb[0].mxu0
    %v1192 = vadd.f32 0.0, %v1191
    %v1193 = vpop.f32.mrb[0].mxu0
    %v1194 = vadd.f32 0.0, %v1193
    %1195 = vmatprep.mubr.bf16.mxu0 0
    %1196 = vmatmul.mubr.bf16.gmra.mrb[0].mxu0 %v970
    %v1197 = vpop.f32.mrb[0].mxu0
    %v1198 = vadd.f32 0.0, %v1197
    %v1199 = vpop.f32.mrb[0].mxu0
    %v1200 = vadd.f32 0.0, %v1199
    %v1201 = vpop.f32.mrb[0].mxu0
    %v1202 = vadd.f32 0.0, %v1201
    %v1203 = vpop.f32.mrb[0].mxu0
    %v1204 = vadd.f32 0.0, %v1203
    %1205 = vmatprep.mubr.bf16.mxu0 0
    %1206 = vmatmul.mubr.bf16.gmra.mrb[0].mxu0 %v971
    %v1207 = vpop.f32.mrb[0].mxu0
    %v1208 = vadd.f32 0.0, %v1207
    %v1209 = vpop.f32.mrb[0].mxu0
    %v1210 = vadd.f32 0.0, %v1209
    %v1211 = vpop.f32.mrb[0].mxu0
    %v1212 = vadd.f32 0.0, %v1211
    %v1213 = vpop.f32.mrb[0].mxu0
    %v1214 = vadd.f32 0.0, %v1213
    %1215 = vmatprep.mubr.bf16.mxu0 0
    %1216 = vmatmul.mubr.bf16.gmra.mrb[0].mxu0 %v972
    %v1217 = vpop.f32.mrb[0].mxu0
    %v1218 = vadd.f32 0.0, %v1217
    %v1219 = vpop.f32.mrb[0].mxu0
    %v1220 = vadd.f32 0.0, %v1219
    %v1221 = vpop.f32.mrb[0].mxu0
    %v1222 = vadd.f32 0.0, %v1221
    %v1223 = vpop.f32.mrb[0].mxu0
    %v1224 = vadd.f32 0.0, %v1223
    %1225 = vmatprep.mubr.bf16.mxu0 0
    %1226 = vmatmul.mubr.bf16.gmra.mrb[0].mxu0 %v973
    %v1227 = vpop.f32.mrb[0].mxu0
    %v1228 = vadd.f32 0.0, %v1227
    %v1229 = vpop.f32.mrb[0].mxu0
    %v1230 = vadd.f32 0.0, %v1229
    %v1231 = vpop.f32.mrb[0].mxu0
    %v1232 = vadd.f32 0.0, %v1231
    %v1233 = vpop.f32.mrb[0].mxu0
    %v1234 = vadd.f32 0.0, %v1233
    %1235 = vmatprep.mubr.bf16.mxu0 0
    %1236 = vmatmul.mubr.bf16.gmra.mrb[0].mxu0 %v974
    %v1237 = vpop.f32.mrb[0].mxu0
    %v1238 = vadd.f32 0.0, %v1237
    %v1239 = vpop.f32.mrb[0].mxu0
    %v1240 = vadd.f32 0.0, %v1239
    %v1241 = vpop.f32.mrb[0].mxu0
    %v1242 = vadd.f32 0.0, %v1241
    %v1243 = vpop.f32.mrb[0].mxu0
    %v1244 = vadd.f32 0.0, %v1243
    %1245 = vmatprep.mubr.bf16.mxu0 0
    %1246 = vmatmul.mubr.bf16.gmra.mrb[0].mxu0 %v975
    %v1247 = vpop.f32.mrb[0].mxu0
    %v1248 = vadd.f32 0.0, %v1247
    %v1249 = vpop.f32.mrb[0].mxu0
    %v1250 = vadd.f32 0.0, %v1249
    %v1251 = vpop.f32.mrb[0].mxu0
    %v1252 = vadd.f32 0.0, %v1251
    %v1253 = vpop.f32.mrb[0].mxu0
    %v1254 = vadd.f32 0.0, %v1253
    %1255 = vmatprep.mubr.bf16.mxu0 0
    %1256 = vmatmul.mubr.bf16.gmra.mrb[0].mxu0 %v976
    %v1257 = vpop.f32.mrb[0].mxu0
    %v1258 = vadd.f32 0.0, %v1257
    %v1259 = vpop.f32.mrb[0].mxu0
    %v1260 = vadd.f32 0.0, %v1259
    %v1261 = vpop.f32.mrb[0].mxu0
    %v1262 = vadd.f32 0.0, %v1261
    %v1263 = vpop.f32.mrb[0].mxu0
    %v1264 = vadd.f32 0.0, %v1263
    %1265 = vdwg.mxu0
    %v1266 = vpack.c.bf16 %v1112, %v1108
    %v1267 = vpack.c.bf16 %v1122, %v1118
    %v1268 = vpack.c.bf16 %v1132, %v1128
    %v1269 = vpack.c.bf16 %v1142, %v1138
    %v1270 = vpack.c.bf16 %v1152, %v1148
    %v1271 = vpack.c.bf16 %v1162, %v1158
    %v1272 = vpack.c.bf16 %v1172, %v1168
    %v1273 = vpack.c.bf16 %v1182, %v1178
    %v1274 = vpack.c.bf16 %v1192, %v1188
    %v1275 = vpack.c.bf16 %v1202, %v1198
    %v1276 = vpack.c.bf16 %v1212, %v1208
    %v1277 = vpack.c.bf16 %v1222, %v1218
    %v1278 = vpack.c.bf16 %v1232, %v1228
    %v1279 = vpack.c.bf16 %v1242, %v1238
    %v1280 = vpack.c.bf16 %v1252, %v1248
    %v1281 = vpack.c.bf16 %v1262, %v1258
    %1282 = vmatprep.subr.bf16.mxu0 0
    %1283 = vmatpush1.bf16.msra.mxu0 %v1266
    %1284 = vmatprep.subr.bf16.mxu0 0
    %1285 = vmatpush1.bf16.msra.mxu0 %v1267
    %1286 = vmatprep.subr.bf16.mxu0 0
    %1287 = vmatpush1.bf16.msra.mxu0 %v1268
    %1288 = vmatprep.subr.bf16.mxu0 0
    %1289 = vmatpush1.bf16.msra.mxu0 %v1269
    %1290 = vmatprep.subr.bf16.mxu0 0
    %1291 = vmatpush1.bf16.msra.mxu0 %v1270
    %1292 = vmatprep.subr.bf16.mxu0 0
    %1293 = vmatpush1.bf16.msra.mxu0 %v1271
    %1294 = vmatprep.subr.bf16.mxu0 0
    %1295 = vmatpush1.bf16.msra.mxu0 %v1272
    %1296 = vmatprep.subr.bf16.mxu0 0
    %1297 = vmatpush1.bf16.msra.mxu0 %v1273
    %1298 = vmatprep.subr.bf16.mxu0 0
    %1299 = vmatpush1.bf16.msra.mxu0 %v1274
    %1300 = vmatprep.subr.bf16.mxu0 0
    %1301 = vmatpush1.bf16.msra.mxu0 %v1275
    %1302 = vmatprep.subr.bf16.mxu0 0
    %1303 = vmatpush1.bf16.msra.mxu0 %v1276
    %1304 = vmatprep.subr.bf16.mxu0 0
    %1305 = vmatpush1.bf16.msra.mxu0 %v1277
    %1306 = vmatprep.subr.bf16.mxu0 0
    %1307 = vmatpush1.bf16.msra.mxu0 %v1278
    %1308 = vmatprep.subr.bf16.mxu0 0
    %1309 = vmatpush1.bf16.msra.mxu0 %v1279
    %1310 = vmatprep.subr.bf16.mxu0 0
    %1311 = vmatpush1.bf16.msra.mxu0 %v1280
    %1312 = vmatprep.subr.bf16.mxu0 0
    %1313 = vmatpush1.bf16.msra.mxu0 %v1281
    %1314 = vmatprep.mubr.bf16.mxu0 %v73
    %1315 = vmatmul.mubr.bf16.gmra.mrb[0].mxu0 %v72
    %v1316 = vpop.f32.mrb[0].mxu0
    %v1317 = vadd.f32 0.0, %v1316
    %v1318 = vpop.f32.mrb[0].mxu0
    %v1319 = vpop.f32.mrb[0].mxu0
    %v1320 = vadd.f32 0.0, %v1319
    %v1321 = vpop.f32.mrb[0].mxu0
    %1322 = vmatprep.mubr.bf16.mxu0 %v75
    %1323 = vmatmul.mubr.bf16.gmra.mrb[0].mxu0 %v74
    %v1324 = vpop.f32.mrb[0].mxu0
    %v1325 = vadd.f32 0.0, %v1324
    %v1326 = vpop.f32.mrb[0].mxu0
    %v1327 = vpop.f32.mrb[0].mxu0
    %v1328 = vadd.f32 0.0, %v1327
    %v1329 = vpop.f32.mrb[0].mxu0
    %1330 = vmatprep.mubr.bf16.mxu0 %v77
    %1331 = vmatmul.mubr.bf16.gmra.mrb[0].mxu0 %v76
    %v1332 = vpop.f32.mrb[0].mxu0
    %v1333 = vadd.f32 0.0, %v1332
    %v1334 = vpop.f32.mrb[0].mxu0
    %v1335 = vpop.f32.mrb[0].mxu0
    %v1336 = vadd.f32 0.0, %v1335
    %v1337 = vpop.f32.mrb[0].mxu0
    %1338 = vmatprep.mubr.bf16.mxu0 %v79
    %1339 = vmatmul.mubr.bf16.gmra.mrb[0].mxu0 %v78
    %v1340 = vpop.f32.mrb[0].mxu0
    %v1341 = vadd.f32 0.0, %v1340
    %v1342 = vpop.f32.mrb[0].mxu0
    %v1343 = vpop.f32.mrb[0].mxu0
    %v1344 = vadd.f32 0.0, %v1343
    %v1345 = vpop.f32.mrb[0].mxu0
    %1346 = vmatprep.mubr.bf16.mxu0 %v81
    %1347 = vmatmul.mubr.bf16.gmra.mrb[0].mxu0 %v80
    %v1348 = vpop.f32.mrb[0].mxu0
    %v1349 = vadd.f32 0.0, %v1348
    %v1350 = vpop.f32.mrb[0].mxu0
    %v1351 = vpop.f32.mrb[0].mxu0
    %v1352 = vadd.f32 0.0, %v1351
    %v1353 = vpop.f32.mrb[0].mxu0
    %1354 = vmatprep.mubr.bf16.mxu0 %v83
    %1355 = vmatmul.mubr.bf16.gmra.mrb[0].mxu0 %v82
    %v1356 = vpop.f32.mrb[0].mxu0
    %v1357 = vadd.f32 0.0, %v1356
    %v1358 = vpop.f32.mrb[0].mxu0
    %v1359 = vpop.f32.mrb[0].mxu0
    %v1360 = vadd.f32 0.0, %v1359
    %v1361 = vpop.f32.mrb[0].mxu0
    %1362 = vmatprep.mubr.bf16.mxu0 %v85
    %1363 = vmatmul.mubr.bf16.gmra.mrb[0].mxu0 %v84
    %v1364 = vpop.f32.mrb[0].mxu0
    %v1365 = vadd.f32 0.0, %v1364
    %v1366 = vpop.f32.mrb[0].mxu0
    %v1367 = vpop.f32.mrb[0].mxu0
    %v1368 = vadd.f32 0.0, %v1367
    %v1369 = vpop.f32.mrb[0].mxu0
    %1370 = vmatprep.mubr.bf16.mxu0 %v87
    %1371 = vmatmul.mubr.bf16.gmra.mrb[0].mxu0 %v86
    %v1372 = vpop.f32.mrb[0].mxu0
    %v1373 = vadd.f32 0.0, %v1372
    %v1374 = vpop.f32.mrb[0].mxu0
    %v1375 = vpop.f32.mrb[0].mxu0
    %v1376 = vadd.f32 0.0, %v1375
    %v1377 = vpop.f32.mrb[0].mxu0
    %1378 = vmatprep.mubr.bf16.mxu0 %v89
    %1379 = vmatmul.mubr.bf16.gmra.mrb[0].mxu0 %v88
    %v1380 = vpop.f32.mrb[0].mxu0
    %v1381 = vadd.f32 0.0, %v1380
    %v1382 = vpop.f32.mrb[0].mxu0
    %v1383 = vpop.f32.mrb[0].mxu0
    %v1384 = vadd.f32 0.0, %v1383
    %v1385 = vpop.f32.mrb[0].mxu0
    %1386 = vmatprep.mubr.bf16.mxu0 %v91
    %1387 = vmatmul.mubr.bf16.gmra.mrb[0].mxu0 %v90
    %v1388 = vpop.f32.mrb[0].mxu0
    %v1389 = vadd.f32 0.0, %v1388
    %v1390 = vpop.f32.mrb[0].mxu0
    %v1391 = vpop.f32.mrb[0].mxu0
    %v1392 = vadd.f32 0.0, %v1391
    %v1393 = vpop.f32.mrb[0].mxu0
    %1394 = vmatprep.mubr.bf16.mxu0 %v93
    %1395 = vmatmul.mubr.bf16.gmra.mrb[0].mxu0 %v92
    %v1396 = vpop.f32.mrb[0].mxu0
    %v1397 = vadd.f32 0.0, %v1396
    %v1398 = vpop.f32.mrb[0].mxu0
    %v1399 = vpop.f32.mrb[0].mxu0
    %v1400 = vadd.f32 0.0, %v1399
    %v1401 = vpop.f32.mrb[0].mxu0
    %1402 = vmatprep.mubr.bf16.mxu0 %v95
    %1403 = vmatmul.mubr.bf16.gmra.mrb[0].mxu0 %v94
    %v1404 = vpop.f32.mrb[0].mxu0
    %v1405 = vadd.f32 0.0, %v1404
    %v1406 = vpop.f32.mrb[0].mxu0
    %v1407 = vpop.f32.mrb[0].mxu0
    %v1408 = vadd.f32 0.0, %v1407
    %v1409 = vpop.f32.mrb[0].mxu0
    %1410 = vmatprep.mubr.bf16.mxu0 %v97
    %1411 = vmatmul.mubr.bf16.gmra.mrb[0].mxu0 %v96
    %v1412 = vpop.f32.mrb[0].mxu0
    %v1413 = vadd.f32 0.0, %v1412
    %v1414 = vpop.f32.mrb[0].mxu0
    %v1415 = vpop.f32.mrb[0].mxu0
    %v1416 = vadd.f32 0.0, %v1415
    %v1417 = vpop.f32.mrb[0].mxu0
    %1418 = vmatprep.mubr.bf16.mxu0 %v99
    %1419 = vmatmul.mubr.bf16.gmra.mrb[0].mxu0 %v98
    %v1420 = vpop.f32.mrb[0].mxu0
    %v1421 = vadd.f32 0.0, %v1420
    %v1422 = vpop.f32.mrb[0].mxu0
    %v1423 = vpop.f32.mrb[0].mxu0
    %v1424 = vadd.f32 0.0, %v1423
    %v1425 = vpop.f32.mrb[0].mxu0
    %1426 = vmatprep.mubr.bf16.mxu0 %v101
    %1427 = vmatmul.mubr.bf16.gmra.mrb[0].mxu0 %v100
    %v1428 = vpop.f32.mrb[0].mxu0
    %v1429 = vadd.f32 0.0, %v1428
    %v1430 = vpop.f32.mrb[0].mxu0
    %v1431 = vpop.f32.mrb[0].mxu0
    %v1432 = vadd.f32 0.0, %v1431
    %v1433 = vpop.f32.mrb[0].mxu0
    %1434 = vmatprep.mubr.bf16.mxu0 %v103
    %1435 = vmatmul.mubr.bf16.gmra.mrb[0].mxu0 %v102
    %v1436 = vpop.f32.mrb[0].mxu0
    %v1437 = vadd.f32 0.0, %v1436
    %v1438 = vpop.f32.mrb[0].mxu0
    %v1439 = vpop.f32.mrb[0].mxu0
    %v1440 = vadd.f32 0.0, %v1439
    %v1441 = vpop.f32.mrb[0].mxu0
    %1442 = vdwg.mxu0
    %v1443 = vmul.f32 %v1317, %v428
    %v1444 = vmul.f32 %v1320, %v433
    %v1445 = vmul.f32 %v1325, %v438
    %v1446 = vmul.f32 %v1328, %v443
    %v1447 = vmul.f32 %v1333, %v448
    %v1448 = vmul.f32 %v1336, %v453
    %v1449 = vmul.f32 %v1341, %v458
    %v1450 = vmul.f32 %v1344, %v463
    %v1451 = vmul.f32 %v1349, %v468
    %v1452 = vmul.f32 %v1352, %v473
    %v1453 = vmul.f32 %v1357, %v478
    %v1454 = vmul.f32 %v1360, %v483
    %v1455 = vmul.f32 %v1365, %v488
    %v1456 = vmul.f32 %v1368, %v493
    %v1457 = vmul.f32 %v1373, %v498
    %v1458 = vmul.f32 %v1376, %v503
    %v1459 = vmul.f32 %v1381, %v508
    %v1460 = vmul.f32 %v1384, %v513
    %v1461 = vmul.f32 %v1389, %v518
    %v1462 = vmul.f32 %v1392, %v523
    %v1463 = vmul.f32 %v1397, %v528
    %v1464 = vmul.f32 %v1400, %v533
    %v1465 = vmul.f32 %v1405, %v538
    %v1466 = vmul.f32 %v1408, %v543
    %v1467 = vmul.f32 %v1413, %v548
    %v1468 = vmul.f32 %v1416, %v553
    %v1469 = vmul.f32 %v1421, %v558
    %v1470 = vmul.f32 %v1424, %v563
    %v1471 = vmul.f32 %v1429, %v568
    %v1472 = vmul.f32 %v1432, %v573
    %v1473 = vmul.f32 %v1437, %v578
    %v1474 = vmul.f32 %v1440, %v583
    %v1475 = vadd.f32 %v1443, %v1110
    %v1476 = vadd.f32 %v1444, %v1114
    %v1477 = vadd.f32 %v1445, %v1120
    %v1478 = vadd.f32 %v1446, %v1124
    %v1479 = vadd.f32 %v1447, %v1130
    %v1480 = vadd.f32 %v1448, %v1134
    %v1481 = vadd.f32 %v1449, %v1140
    %v1482 = vadd.f32 %v1450, %v1144
    %v1483 = vadd.f32 %v1451, %v1150
    %v1484 = vadd.f32 %v1452, %v1154
    %v1485 = vadd.f32 %v1453, %v1160
    %v1486 = vadd.f32 %v1454, %v1164
    %v1487 = vadd.f32 %v1455, %v1170
    %v1488 = vadd.f32 %v1456, %v1174
    %v1489 = vadd.f32 %v1457, %v1180
    %v1490 = vadd.f32 %v1458, %v1184
    %v1491 = vadd.f32 %v1459, %v1190
    %v1492 = vadd.f32 %v1460, %v1194
    %v1493 = vadd.f32 %v1461, %v1200
    %v1494 = vadd.f32 %v1462, %v1204
    %v1495 = vadd.f32 %v1463, %v1210
    %v1496 = vadd.f32 %v1464, %v1214
    %v1497 = vadd.f32 %v1465, %v1220
    %v1498 = vadd.f32 %v1466, %v1224
    %v1499 = vadd.f32 %v1467, %v1230
    %v1500 = vadd.f32 %v1468, %v1234
    %v1501 = vadd.f32 %v1469, %v1240
    %v1502 = vadd.f32 %v1470, %v1244
    %v1503 = vadd.f32 %v1471, %v1250
    %v1504 = vadd.f32 %v1472, %v1254
    %v1505 = vadd.f32 %v1473, %v1260
    %v1506 = vadd.f32 %v1474, %v1264
    %v1507 = vld [vmem:[%s6] sm:$0x1]
    %v1509 = vlaneseq
    %v1510 = vshrl.u32 %v1509, 7
    %v1511 = vsub.s32 0, %v1510
    %v1512 = vrot.slane %v1507, %v1511
    %v1514 = vadd.f32 %v1475, %v1512
    %v1515 = vadd.f32 %v1476, %v1512
    %v1516 = vadd.f32 %v1477, %v1512
    %v1517 = vadd.f32 %v1478, %v1512
    %v1518 = vadd.f32 %v1479, %v1512
    %v1519 = vadd.f32 %v1480, %v1512
    %v1520 = vadd.f32 %v1481, %v1512
    %v1521 = vadd.f32 %v1482, %v1512
    %v1522 = vadd.f32 %v1483, %v1512
    %v1523 = vadd.f32 %v1484, %v1512
    %v1524 = vadd.f32 %v1485, %v1512
    %v1525 = vadd.f32 %v1486, %v1512
    %v1526 = vadd.f32 %v1487, %v1512
    %v1527 = vadd.f32 %v1488, %v1512
    %v1528 = vadd.f32 %v1489, %v1512
    %v1529 = vadd.f32 %v1490, %v1512
    %v1530 = vadd.f32 %v1491, %v1512
    %v1531 = vadd.f32 %v1492, %v1512
    %v1532 = vadd.f32 %v1493, %v1512
    %v1533 = vadd.f32 %v1494, %v1512
    %v1534 = vadd.f32 %v1495, %v1512
    %v1535 = vadd.f32 %v1496, %v1512
    %v1536 = vadd.f32 %v1497, %v1512
    %v1537 = vadd.f32 %v1498, %v1512
    %v1538 = vadd.f32 %v1499, %v1512
    %v1539 = vadd.f32 %v1500, %v1512
    %v1540 = vadd.f32 %v1501, %v1512
    %v1541 = vadd.f32 %v1502, %v1512
    %v1542 = vadd.f32 %v1503, %v1512
    %v1543 = vadd.f32 %v1504, %v1512
    %v1544 = vadd.f32 %v1505, %v1512
    %v1545 = vadd.f32 %v1506, %v1512
    %v1546 = vlaneseq
    %v1547 = vand.u32 %v1546, 127
    %vm1548 = vcmp.lt.s32.totalorder %v1547, 8
    %v1549 = vsel %vm1548, %v1514, -1e+30
    %v1550 = vsel %vm1548, %v1515, -1e+30
    %v1551 = vsel %vm1548, %v1516, -1e+30
    %v1552 = vsel %vm1548, %v1517, -1e+30
    %v1553 = vsel %vm1548, %v1518, -1e+30
    %v1554 = vsel %vm1548, %v1519, -1e+30
    %v1555 = vsel %vm1548, %v1520, -1e+30
    %v1556 = vsel %vm1548, %v1521, -1e+30
    %v1557 = vsel %vm1548, %v1522, -1e+30
    %v1558 = vsel %vm1548, %v1523, -1e+30
    %v1559 = vsel %vm1548, %v1524, -1e+30
    %v1560 = vsel %vm1548, %v1525, -1e+30
    %v1561 = vsel %vm1548, %v1526, -1e+30
    %v1562 = vsel %vm1548, %v1527, -1e+30
    %v1563 = vsel %vm1548, %v1528, -1e+30
    %v1564 = vsel %vm1548, %v1529, -1e+30
    %v1565 = vsel %vm1548, %v1530, -1e+30
    %v1566 = vsel %vm1548, %v1531, -1e+30
    %v1567 = vsel %vm1548, %v1532, -1e+30
    %v1568 = vsel %vm1548, %v1533, -1e+30
    %v1569 = vsel %vm1548, %v1534, -1e+30
    %v1570 = vsel %vm1548, %v1535, -1e+30
    %v1571 = vsel %vm1548, %v1536, -1e+30
    %v1572 = vsel %vm1548, %v1537, -1e+30
    %v1573 = vsel %vm1548, %v1538, -1e+30
    %v1574 = vsel %vm1548, %v1539, -1e+30
    %v1575 = vsel %vm1548, %v1540, -1e+30
    %v1576 = vsel %vm1548, %v1541, -1e+30
    %v1577 = vsel %vm1548, %v1542, -1e+30
    %v1578 = vsel %vm1548, %v1543, -1e+30
    %v1579 = vsel %vm1548, %v1544, -1e+30
    %v1580 = vsel %vm1548, %v1545, -1e+30
    %1581 = vmax.xlane.f32.xlu0 %v1549
    %v1582 = vpop.xlane.xlu0 %1581
    %1583 = vmax.xlane.f32.xlu0 %v1550
    %v1584 = vpop.xlane.xlu0 %1583
    %1585 = vmax.xlane.f32.xlu0 %v1551
    %v1586 = vpop.xlane.xlu0 %1585
    %1587 = vmax.xlane.f32.xlu0 %v1552
    %v1588 = vpop.xlane.xlu0 %1587
    %1589 = vmax.xlane.f32.xlu0 %v1553
    %v1590 = vpop.xlane.xlu0 %1589
    %1591 = vmax.xlane.f32.xlu0 %v1554
    %v1592 = vpop.xlane.xlu0 %1591
    %1593 = vmax.xlane.f32.xlu0 %v1555
    %v1594 = vpop.xlane.xlu0 %1593
    %1595 = vmax.xlane.f32.xlu0 %v1556
    %v1596 = vpop.xlane.xlu0 %1595
    %1597 = vmax.xlane.f32.xlu0 %v1557
    %v1598 = vpop.xlane.xlu0 %1597
    %1599 = vmax.xlane.f32.xlu0 %v1558
    %v1600 = vpop.xlane.xlu0 %1599
    %1601 = vmax.xlane.f32.xlu0 %v1559
    %v1602 = vpop.xlane.xlu0 %1601
    %1603 = vmax.xlane.f32.xlu0 %v1560
    %v1604 = vpop.xlane.xlu0 %1603
    %1605 = vmax.xlane.f32.xlu0 %v1561
    %v1606 = vpop.xlane.xlu0 %1605
    %1607 = vmax.xlane.f32.xlu0 %v1562
    %v1608 = vpop.xlane.xlu0 %1607
    %1609 = vmax.xlane.f32.xlu0 %v1563
    %v1610 = vpop.xlane.xlu0 %1609
    %1611 = vmax.xlane.f32.xlu0 %v1564
    %v1612 = vpop.xlane.xlu0 %1611
    %1613 = vmax.xlane.f32.xlu0 %v1565
    %v1614 = vpop.xlane.xlu0 %1613
    %1615 = vmax.xlane.f32.xlu0 %v1566
    %v1616 = vpop.xlane.xlu0 %1615
    %1617 = vmax.xlane.f32.xlu0 %v1567
    %v1618 = vpop.xlane.xlu0 %1617
    %1619 = vmax.xlane.f32.xlu0 %v1568
    %v1620 = vpop.xlane.xlu0 %1619
    %1621 = vmax.xlane.f32.xlu0 %v1569
    %v1622 = vpop.xlane.xlu0 %1621
    %1623 = vmax.xlane.f32.xlu0 %v1570
    %v1624 = vpop.xlane.xlu0 %1623
    %1625 = vmax.xlane.f32.xlu0 %v1571
    %v1626 = vpop.xlane.xlu0 %1625
    %1627 = vmax.xlane.f32.xlu0 %v1572
    %v1628 = vpop.xlane.xlu0 %1627
    %1629 = vmax.xlane.f32.xlu0 %v1573
    %v1630 = vpop.xlane.xlu0 %1629
    %1631 = vmax.xlane.f32.xlu0 %v1574
    %v1632 = vpop.xlane.xlu0 %1631
    %1633 = vmax.xlane.f32.xlu0 %v1575
    %v1634 = vpop.xlane.xlu0 %1633
    %1635 = vmax.xlane.f32.xlu0 %v1576
    %v1636 = vpop.xlane.xlu0 %1635
    %1637 = vmax.xlane.f32.xlu0 %v1577
    %v1638 = vpop.xlane.xlu0 %1637
    %1639 = vmax.xlane.f32.xlu0 %v1578
    %v1640 = vpop.xlane.xlu0 %1639
    %1641 = vmax.xlane.f32.xlu0 %v1579
    %v1642 = vpop.xlane.xlu0 %1641
    %1643 = vmax.xlane.f32.xlu0 %v1580
    %v1644 = vpop.xlane.xlu0 %1643
    %v1645 = vsub.f32 %v1549, %v1582
    %v1646 = vsub.f32 %v1550, %v1584
    %v1647 = vsub.f32 %v1551, %v1586
    %v1648 = vsub.f32 %v1552, %v1588
    %v1649 = vsub.f32 %v1553, %v1590
    %v1650 = vsub.f32 %v1554, %v1592
    %v1651 = vsub.f32 %v1555, %v1594
    %v1652 = vsub.f32 %v1556, %v1596
    %v1653 = vsub.f32 %v1557, %v1598
    %v1654 = vsub.f32 %v1558, %v1600
    %v1655 = vsub.f32 %v1559, %v1602
    %v1656 = vsub.f32 %v1560, %v1604
    %v1657 = vsub.f32 %v1561, %v1606
    %v1658 = vsub.f32 %v1562, %v1608
    %v1659 = vsub.f32 %v1563, %v1610
    %v1660 = vsub.f32 %v1564, %v1612
    %v1661 = vsub.f32 %v1565, %v1614
    %v1662 = vsub.f32 %v1566, %v1616
    %v1663 = vsub.f32 %v1567, %v1618
    %v1664 = vsub.f32 %v1568, %v1620
    %v1665 = vsub.f32 %v1569, %v1622
    %v1666 = vsub.f32 %v1570, %v1624
    %v1667 = vsub.f32 %v1571, %v1626
    %v1668 = vsub.f32 %v1572, %v1628
    %v1669 = vsub.f32 %v1573, %v1630
    %v1670 = vsub.f32 %v1574, %v1632
    %v1671 = vsub.f32 %v1575, %v1634
    %v1672 = vsub.f32 %v1576, %v1636
    %v1673 = vsub.f32 %v1577, %v1638
    %v1674 = vsub.f32 %v1578, %v1640
    %v1675 = vsub.f32 %v1579, %v1642
    %v1676 = vsub.f32 %v1580, %v1644
    %v1677 = vmul.f32 %v1645, 1.442695
    %v1678 = vpow.pop %v1677
    %v1679 = vmul.f32 %v1646, 1.442695
    %v1680 = vpow.pop %v1679
    %v1681 = vmul.f32 %v1647, 1.442695
    %v1682 = vpow.pop %v1681
    %v1683 = vmul.f32 %v1648, 1.442695
    %v1684 = vpow.pop %v1683
    %v1685 = vmul.f32 %v1649, 1.442695
    %v1686 = vpow.pop %v1685
    %v1687 = vmul.f32 %v1650, 1.442695
    %v1688 = vpow.pop %v1687
    %v1689 = vmul.f32 %v1651, 1.442695
    %v1690 = vpow.pop %v1689
    %v1691 = vmul.f32 %v1652, 1.442695
    %v1692 = vpow.pop %v1691
    %v1693 = vmul.f32 %v1653, 1.442695
    %v1694 = vpow.pop %v1693
    %v1695 = vmul.f32 %v1654, 1.442695
    %v1696 = vpow.pop %v1695
    %v1697 = vmul.f32 %v1655, 1.442695
    %v1698 = vpow.pop %v1697
    %v1699 = vmul.f32 %v1656, 1.442695
    %v1700 = vpow.pop %v1699
    %v1701 = vmul.f32 %v1657, 1.442695
    %v1702 = vpow.pop %v1701
    %v1703 = vmul.f32 %v1658, 1.442695
    %v1704 = vpow.pop %v1703
    %v1705 = vmul.f32 %v1659, 1.442695
    %v1706 = vpow.pop %v1705
    %v1707 = vmul.f32 %v1660, 1.442695
    %v1708 = vpow.pop %v1707
    %v1709 = vmul.f32 %v1661, 1.442695
    %v1710 = vpow.pop %v1709
    %v1711 = vmul.f32 %v1662, 1.442695
    %v1712 = vpow.pop %v1711
    %v1713 = vmul.f32 %v1663, 1.442695
    %v1714 = vpow.pop %v1713
    %v1715 = vmul.f32 %v1664, 1.442695
    %v1716 = vpow.pop %v1715
    %v1717 = vmul.f32 %v1665, 1.442695
    %v1718 = vpow.pop %v1717
    %v1719 = vmul.f32 %v1666, 1.442695
    %v1720 = vpow.pop %v1719
    %v1721 = vmul.f32 %v1667, 1.442695
    %v1722 = vpow.pop %v1721
    %v1723 = vmul.f32 %v1668, 1.442695
    %v1724 = vpow.pop %v1723
    %v1725 = vmul.f32 %v1669, 1.442695
    %v1726 = vpow.pop %v1725
    %v1727 = vmul.f32 %v1670, 1.442695
    %v1728 = vpow.pop %v1727
    %v1729 = vmul.f32 %v1671, 1.442695
    %v1730 = vpow.pop %v1729
    %v1731 = vmul.f32 %v1672, 1.442695
    %v1732 = vpow.pop %v1731
    %v1733 = vmul.f32 %v1673, 1.442695
    %v1734 = vpow.pop %v1733
    %v1735 = vmul.f32 %v1674, 1.442695
    %v1736 = vpow.pop %v1735
    %v1737 = vmul.f32 %v1675, 1.442695
    %v1738 = vpow.pop %v1737
    %v1739 = vmul.f32 %v1676, 1.442695
    %v1740 = vpow.pop %v1739
    %1741 = vadd.xlane.f32.xlu0 %v1678
    %v1742 = vpop.xlane.xlu0 %1741
    %1743 = vadd.xlane.f32.xlu0 %v1680
    %v1744 = vpop.xlane.xlu0 %1743
    %1745 = vadd.xlane.f32.xlu0 %v1682
    %v1746 = vpop.xlane.xlu0 %1745
    %1747 = vadd.xlane.f32.xlu0 %v1684
    %v1748 = vpop.xlane.xlu0 %1747
    %1749 = vadd.xlane.f32.xlu0 %v1686
    %v1750 = vpop.xlane.xlu0 %1749
    %1751 = vadd.xlane.f32.xlu0 %v1688
    %v1752 = vpop.xlane.xlu0 %1751
    %1753 = vadd.xlane.f32.xlu0 %v1690
    %v1754 = vpop.xlane.xlu0 %1753
    %1755 = vadd.xlane.f32.xlu0 %v1692
    %v1756 = vpop.xlane.xlu0 %1755
    %1757 = vadd.xlane.f32.xlu0 %v1694
    %v1758 = vpop.xlane.xlu0 %1757
    %1759 = vadd.xlane.f32.xlu0 %v1696
    %v1760 = vpop.xlane.xlu0 %1759
    %1761 = vadd.xlane.f32.xlu0 %v1698
    %v1762 = vpop.xlane.xlu0 %1761
    %1763 = vadd.xlane.f32.xlu0 %v1700
    %v1764 = vpop.xlane.xlu0 %1763
    %1765 = vadd.xlane.f32.xlu0 %v1702
    %v1766 = vpop.xlane.xlu0 %1765
    %1767 = vadd.xlane.f32.xlu0 %v1704
    %v1768 = vpop.xlane.xlu0 %1767
    %1769 = vadd.xlane.f32.xlu0 %v1706
    %v1770 = vpop.xlane.xlu0 %1769
    %1771 = vadd.xlane.f32.xlu0 %v1708
    %v1772 = vpop.xlane.xlu0 %1771
    %1773 = vadd.xlane.f32.xlu0 %v1710
    %v1774 = vpop.xlane.xlu0 %1773
    %1775 = vadd.xlane.f32.xlu0 %v1712
    %v1776 = vpop.xlane.xlu0 %1775
    %1777 = vadd.xlane.f32.xlu0 %v1714
    %v1778 = vpop.xlane.xlu0 %1777
    %1779 = vadd.xlane.f32.xlu0 %v1716
    %v1780 = vpop.xlane.xlu0 %1779
    %1781 = vadd.xlane.f32.xlu0 %v1718
    %v1782 = vpop.xlane.xlu0 %1781
    %1783 = vadd.xlane.f32.xlu0 %v1720
    %v1784 = vpop.xlane.xlu0 %1783
    %1785 = vadd.xlane.f32.xlu0 %v1722
    %v1786 = vpop.xlane.xlu0 %1785
    %1787 = vadd.xlane.f32.xlu0 %v1724
    %v1788 = vpop.xlane.xlu0 %1787
    %1789 = vadd.xlane.f32.xlu0 %v1726
    %v1790 = vpop.xlane.xlu0 %1789
    %1791 = vadd.xlane.f32.xlu0 %v1728
    %v1792 = vpop.xlane.xlu0 %1791
    %1793 = vadd.xlane.f32.xlu0 %v1730
    %v1794 = vpop.xlane.xlu0 %1793
    %1795 = vadd.xlane.f32.xlu0 %v1732
    %v1796 = vpop.xlane.xlu0 %1795
    %1797 = vadd.xlane.f32.xlu0 %v1734
    %v1798 = vpop.xlane.xlu0 %1797
    %1799 = vadd.xlane.f32.xlu0 %v1736
    %v1800 = vpop.xlane.xlu0 %1799
    %1801 = vadd.xlane.f32.xlu0 %v1738
    %v1802 = vpop.xlane.xlu0 %1801
    %1803 = vadd.xlane.f32.xlu0 %v1740
    %v1804 = vpop.xlane.xlu0 %1803
    %v1805 = vlog2.pop %v1742
    %v1806 = vmul.f32 %v1805, 0.6931472
    %v1807 = vlog2.pop %v1744
    %v1808 = vmul.f32 %v1807, 0.6931472
    %v1809 = vlog2.pop %v1746
    %v1810 = vmul.f32 %v1809, 0.6931472
    %v1811 = vlog2.pop %v1748
    %v1812 = vmul.f32 %v1811, 0.6931472
    %v1813 = vlog2.pop %v1750
    %v1814 = vmul.f32 %v1813, 0.6931472
    %v1815 = vlog2.pop %v1752
    %v1816 = vmul.f32 %v1815, 0.6931472
    %v1817 = vlog2.pop %v1754
    %v1818 = vmul.f32 %v1817, 0.6931472
    %v1819 = vlog2.pop %v1756
    %v1820 = vmul.f32 %v1819, 0.6931472
    %v1821 = vlog2.pop %v1758
    %v1822 = vmul.f32 %v1821, 0.6931472
    %v1823 = vlog2.pop %v1760
    %v1824 = vmul.f32 %v1823, 0.6931472
    %v1825 = vlog2.pop %v1762
    %v1826 = vmul.f32 %v1825, 0.6931472
    %v1827 = vlog2.pop %v1764
    %v1828 = vmul.f32 %v1827, 0.6931472
    %v1829 = vlog2.pop %v1766
    %v1830 = vmul.f32 %v1829, 0.6931472
    %v1831 = vlog2.pop %v1768
    %v1832 = vmul.f32 %v1831, 0.6931472
    %v1833 = vlog2.pop %v1770
    %v1834 = vmul.f32 %v1833, 0.6931472
    %v1835 = vlog2.pop %v1772
    %v1836 = vmul.f32 %v1835, 0.6931472
    %v1837 = vlog2.pop %v1774
    %v1838 = vmul.f32 %v1837, 0.6931472
    %v1839 = vlog2.pop %v1776
    %v1840 = vmul.f32 %v1839, 0.6931472
    %v1841 = vlog2.pop %v1778
    %v1842 = vmul.f32 %v1841, 0.6931472
    %v1843 = vlog2.pop %v1780
    %v1844 = vmul.f32 %v1843, 0.6931472
    %v1845 = vlog2.pop %v1782
    %v1846 = vmul.f32 %v1845, 0.6931472
    %v1847 = vlog2.pop %v1784
    %v1848 = vmul.f32 %v1847, 0.6931472
    %v1849 = vlog2.pop %v1786
    %v1850 = vmul.f32 %v1849, 0.6931472
    %v1851 = vlog2.pop %v1788
    %v1852 = vmul.f32 %v1851, 0.6931472
    %v1853 = vlog2.pop %v1790
    %v1854 = vmul.f32 %v1853, 0.6931472
    %v1855 = vlog2.pop %v1792
    %v1856 = vmul.f32 %v1855, 0.6931472
    %v1857 = vlog2.pop %v1794
    %v1858 = vmul.f32 %v1857, 0.6931472
    %v1859 = vlog2.pop %v1796
    %v1860 = vmul.f32 %v1859, 0.6931472
    %v1861 = vlog2.pop %v1798
    %v1862 = vmul.f32 %v1861, 0.6931472
    %v1863 = vlog2.pop %v1800
    %v1864 = vmul.f32 %v1863, 0.6931472
    %v1865 = vlog2.pop %v1802
    %v1866 = vmul.f32 %v1865, 0.6931472
    %v1867 = vlog2.pop %v1804
    %v1868 = vmul.f32 %v1867, 0.6931472
    %v1869 = vsub.f32 %v1645, %v1806
    %v1870 = vsub.f32 %v1646, %v1808
    %v1871 = vsub.f32 %v1647, %v1810
    %v1872 = vsub.f32 %v1648, %v1812
    %v1873 = vsub.f32 %v1649, %v1814
    %v1874 = vsub.f32 %v1650, %v1816
    %v1875 = vsub.f32 %v1651, %v1818
    %v1876 = vsub.f32 %v1652, %v1820
    %v1877 = vsub.f32 %v1653, %v1822
    %v1878 = vsub.f32 %v1654, %v1824
    %v1879 = vsub.f32 %v1655, %v1826
    %v1880 = vsub.f32 %v1656, %v1828
    %v1881 = vsub.f32 %v1657, %v1830
    %v1882 = vsub.f32 %v1658, %v1832
    %v1883 = vsub.f32 %v1659, %v1834
    %v1884 = vsub.f32 %v1660, %v1836
    %v1885 = vsub.f32 %v1661, %v1838
    %v1886 = vsub.f32 %v1662, %v1840
    %v1887 = vsub.f32 %v1663, %v1842
    %v1888 = vsub.f32 %v1664, %v1844
    %v1889 = vsub.f32 %v1665, %v1846
    %v1890 = vsub.f32 %v1666, %v1848
    %v1891 = vsub.f32 %v1667, %v1850
    %v1892 = vsub.f32 %v1668, %v1852
    %v1893 = vsub.f32 %v1669, %v1854
    %v1894 = vsub.f32 %v1670, %v1856
    %v1895 = vsub.f32 %v1671, %v1858
    %v1896 = vsub.f32 %v1672, %v1860
    %v1897 = vsub.f32 %v1673, %v1862
    %v1898 = vsub.f32 %v1674, %v1864
    %v1899 = vsub.f32 %v1675, %v1866
    %v1900 = vsub.f32 %v1676, %v1868
    %1901 = vst [vmem:[#allocation7] sm:$0xff] %v1869
    %1902 = vst [vmem:[#allocation7 + $0x8] sm:$0xff] %v1870
    %1903 = vst [vmem:[#allocation7 + $0x10] sm:$0xff] %v1871
    %1904 = vst [vmem:[#allocation7 + $0x18] sm:$0xff] %v1872
    %1905 = vst [vmem:[#allocation7 + $0x20] sm:$0xff] %v1873
    %1906 = vst [vmem:[#allocation7 + $0x28] sm:$0xff] %v1874
    %1907 = vst [vmem:[#allocation7 + $0x30] sm:$0xff] %v1875
    %1908 = vst [vmem:[#allocation7 + $0x38] sm:$0xff] %v1876
    %1909 = vst [vmem:[#allocation7 + $0x40] sm:$0xff] %v1877
    %1910 = vst [vmem:[#allocation7 + $0x48] sm:$0xff] %v1878
    %1911 = vst [vmem:[#allocation7 + $0x50] sm:$0xff] %v1879
    %1912 = vst [vmem:[#allocation7 + $0x58] sm:$0xff] %v1880
    %1913 = vst [vmem:[#allocation7 + $0x60] sm:$0xff] %v1881
    %1914 = vst [vmem:[#allocation7 + $0x68] sm:$0xff] %v1882
    %1915 = vst [vmem:[#allocation7 + $0x70] sm:$0xff] %v1883
    %1916 = vst [vmem:[#allocation7 + $0x78] sm:$0xff] %v1884
    %1917 = vst [vmem:[#allocation7 + $0x80] sm:$0xff] %v1885
    %1918 = vst [vmem:[#allocation7 + $0x88] sm:$0xff] %v1886
    %1919 = vst [vmem:[#allocation7 + $0x90] sm:$0xff] %v1887
    %1920 = vst [vmem:[#allocation7 + $0x98] sm:$0xff] %v1888
    %1921 = vst [vmem:[#allocation7 + $0xa0] sm:$0xff] %v1889
    %1922 = vst [vmem:[#allocation7 + $0xa8] sm:$0xff] %v1890
    %1923 = vst [vmem:[#allocation7 + $0xb0] sm:$0xff] %v1891
    %1924 = vst [vmem:[#allocation7 + $0xb8] sm:$0xff] %v1892
    %1925 = vst [vmem:[#allocation7 + $0xc0] sm:$0xff] %v1893
    %1926 = vst [vmem:[#allocation7 + $0xc8] sm:$0xff] %v1894
    %1927 = vst [vmem:[#allocation7 + $0xd0] sm:$0xff] %v1895
    %1928 = vst [vmem:[#allocation7 + $0xd8] sm:$0xff] %v1896
    %1929 = vst [vmem:[#allocation7 + $0xe0] sm:$0xff] %v1897
    %1930 = vst [vmem:[#allocation7 + $0xe8] sm:$0xff] %v1898
    %1931 = vst [vmem:[#allocation7 + $0xf0] sm:$0xff] %v1899
    %1932 = vst [vmem:[#allocation7 + $0xf8] sm:$0xff] %v1900
    // Predicated region
    $region38: #{tpu_custom_call.1} parent=1 // pred_check
      _
    $region39: #{tpu_custom_call.1} parent=1 // pred_check_branch
      %1934 = sbr.rel (0) target = $region41
    $region40: #{tpu_custom_call.1} parent=1 // pred_region
      %s1936 = ssub.s32 4096, 4096
      %1937 = vsyncadd [#allocation4], %s1936
      %s1938 = sshll.u32 [#allocation7], 4
      %s1939 = int_to_ptr.vmem [resolvable:$true] %s1938
      %1944 = dma.vmem_to_hbm [thread:$0]  %s1939, 4096, %s7, [#allocation4], 128, 128, 8
    $region41: #{tpu_custom_call.1} parent=1 // pred_fallthru
      _
    // Predicated region
    $region42: #{tpu_custom_call.1} parent=1 // pred_check
      _
    $region43: #{tpu_custom_call.1} parent=1 // pred_check_branch
      %1946 = sbr.rel (0) target = $region45
    $region44: #{tpu_custom_call.1} parent=1 // pred_region
      %1947 = dma.done [#allocation4], 4096
    $region45: #{tpu_custom_call.1} parent=1 // pred_fallthru
      _
    %1948 = vsyncpa [#allocation3], 1
    %1949 = vsyncpa [#allocation6], 1
    %1950 = vsyncpa [#allocation4], 1

</llo_original>
